<compile_context>
chip_gen: v5e
topology: v5e:2x2
jax: 0.10.0
libtpu: 0.0.40
codegen_flags: <defaults>
</compile_context>

<pallas_src>
import functools

import jax
import jax.numpy as jnp
from jax import lax
from jax.experimental import pallas as pl
from jax.experimental.pallas import tpu as pltpu

NMS_RADIUS = 4
DESC_DIM = 256


# ------------------------------ per-chip budgets ------------------------------
@functools.lru_cache(maxsize=None)
def _budgets():
    """(row_tile_cap, scoped_vmem_limit_bytes) derived from physical VMEM."""
    phys = 128 * 1024 * 1024
    try:
        info_fn = getattr(pltpu, "get_tpu_info", None)
        if info_fn is not None:
            phys = int(info_fn().vmem_capacity_bytes)
    except Exception:
        pass
    if phys <= 64 * 1024 * 1024:            # v7x-class TensorCore (64 MiB VMEM)
        return 16, 40 * 1024 * 1024
    return 64, 96 * 1024 * 1024             # v5e / v6e (128 MiB physical VMEM)


def _row_tile(h, cap, even):
    """Largest divisor of h that is <= cap (and even when `even` is True)."""
    best = 0
    for t in range(1, min(h, max(cap, 1)) + 1):
        if h % t == 0 and (not even or t % 2 == 0):
            best = t
    return best if best > 0 else h


def _fit_rows(h, w, bytes_per_row_elem, even):
    """Row tile derived from a bytes-per-row VMEM estimate + per-chip cap."""
    cap, vmem_limit = _budgets()
    derived = max(int(vmem_limit * 0.5) // max(w * bytes_per_row_elem, 1), 2)
    return _row_tile(h, min(cap, derived), even), vmem_limit


# ------------------------- shared conv building blocks ------------------------
def _halo_in_specs(th, h, w, cin):
    """Main row block plus clamped single-row top/bottom halo blocks."""
    return [
        pl.BlockSpec((1, th, w, cin), lambda b, i: (b, i, 0, 0)),
        pl.BlockSpec((1, 1, w, cin),
                     lambda b, i: (b, jnp.maximum(i * th - 1, 0), 0, 0)),
        pl.BlockSpec((1, 1, w, cin),
                     lambda b, i: (b, jnp.minimum((i + 1) * th, h - 1), 0, 0)),
    ]


def _build_dx_slab(slab_ref, x1, ht, hb, tile_i, n_tiles, th, w, cin):
    """Write the dx-packed (th+2, w, 3*cin) bf16 slab.

    Channel block [dx*cin:(dx+1)*cin] at output column x holds input column
    x + dx - 1 (zero outside the image), so one K = 3*cin matmul per dy row
    offset implements the 3x3 'same'-padded conv.  Data is copied once (no
    full-tile row concat).
    """
    def emit(src, r0, r1):
        src = src.astype(slab_ref.dtype)
        z = jnp.zeros((src.shape[0], 1, cin), slab_ref.dtype)
        slab_ref[r0:r1, :, 0:cin] = jnp.concatenate([z, src[:, 0:w - 1, :]], axis=1)
        slab_ref[r0:r1, :, cin:2 * cin] = src
        slab_ref[r0:r1, :, 2 * cin:3 * cin] = jnp.concatenate([src[:, 1:w, :], z], axis=1)

    emit(x1, 1, th + 1)          # main rows -> slab rows 1 .. th
    emit(ht, 0, 1)               # row above the tile
    emit(hb, th + 1, th + 2)     # row below the tile

    zero_row = jnp.zeros((1, w, 3 * cin), slab_ref.dtype)

    @pl.when(tile_i == 0)
    def _():
        slab_ref[0:1, :, :] = zero_row

    @pl.when(tile_i == n_tiles - 1)
    def _():
        slab_ref[th + 1:th + 2, :, :] = zero_row


def _slab_conv(slab_ref, w_ref, b_ref, th, cout):
    """3 matmuls (K = 3*Cin) over the dx-packed slab -> ReLU'd f32 (th, w, cout)."""
    dims = (((2,), (0,)), ((), ()))
    acc = lax.dot_general(slab_ref[0:th, :, :], w_ref[0, :, :], dims,
                          preferred_element_type=jnp.float32)
    acc = acc + lax.dot_general(slab_ref[1:th + 1, :, :], w_ref[1, :, :], dims,
                                preferred_element_type=jnp.float32)
    acc = acc + lax.dot_general(slab_ref[2:th + 2, :, :], w_ref[2, :, :], dims,
                                preferred_element_type=jnp.float32)
    acc = acc + b_ref[...].reshape(1, 1, cout).astype(jnp.float32)
    return jnp.maximum(acc, 0.0)


# ------------------- 3x3 conv + ReLU (+ fused 2x2 max-pool) -------------------
def conv3x3(x, w_packed, b, *, pool):
    """x: (B,H,W,Cin) NHWC; w_packed: (3, 3*Cin, Cout) bf16; b: (1, Cout) f32."""
    B, H, W, Cin = x.shape
    Cout = w_packed.shape[-1]
    K = 3 * Cin
    if pool:
        assert H % 2 == 0 and W % 2 == 0

    bpr = 10 * Cin + 8 * Cout                       # rough VMEM bytes / (row, W elem)
    TH, vmem_limit = _fit_rows(H, W, bpr, even=pool)
    nt = H // TH
    Ho, Wo = (H // 2, W // 2) if pool else (H, W)
    THo = TH // 2 if pool else TH

    def kernel(x1_ref, ht_ref, hb_ref, w_ref, b_ref, o_ref, *scratch):
        i = pl.program_id(1)
        si = 0
        if Cin == 1:
            # TODO(synk): conv1a keeps the VPU broadcast path; a W-on-lanes layout
            # for the single-channel input would avoid the 1-lane channel layout.
            gate_t = jnp.where(i == 0, 0.0, 1.0)
            gate_b = jnp.where(i == nt - 1, 0.0, 1.0)
            x1 = x1_ref[0].astype(jnp.float32)
            ht = ht_ref[0].astype(jnp.float32) * gate_t
            hb = hb_ref[0].astype(jnp.float32) * gate_b
            xcat = jnp.concatenate([ht, x1, hb], axis=0)            # (TH+2, W, 1)
            zcol = jnp.zeros((TH + 2, 1, 1), jnp.float32)
            xpad = jnp.concatenate([zcol, xcat, zcol], axis=1)      # (TH+2, W+2, 1)
            acc = jnp.zeros((TH, W, Cout), jnp.float32)
            for dy in range(3):
                for dx in range(3):
                    xs = xpad[dy:dy + TH, dx:dx + W, :]
                    wk = w_ref[dy, dx:dx + 1, :].astype(jnp.float32).reshape(1, 1, Cout)
                    acc = acc + xs * wk
            acc = acc + b_ref[...].reshape(1, 1, Cout)
            acc = jnp.maximum(acc, 0.0)
        else:
            slab_ref = scratch[si]
            si += 1
            _build_dx_slab(slab_ref, x1_ref[0], ht_ref[0], hb_ref[0], i, nt, TH, W, Cin)
            acc = _slab_conv(slab_ref, w_ref, b_ref, TH, Cout)

        if pool:
            tmp = scratch[si]                                       # (TH//2, W, Cout) f32
            tmp[...] = jnp.max(acc.reshape(TH // 2, 2, W, Cout), axis=1)
            o_ref[0] = jnp.maximum(tmp[:, pl.ds(0, W // 2, 2), :],
                                   tmp[:, pl.ds(1, W // 2, 2), :]).astype(o_ref.dtype)
        else:
            o_ref[0] = acc.astype(o_ref.dtype)

    in_specs = _halo_in_specs(TH, H, W, Cin) + [
        pl.BlockSpec((3, K, Cout), lambda b_, i_: (0, 0, 0)),
        pl.BlockSpec((1, Cout), lambda b_, i_: (0, 0)),
    ]
    out_spec = pl.BlockSpec((1, THo, Wo, Cout), lambda b_, i_: (b_, i_, 0, 0))

    scratch_shapes = []
    if Cin > 1:
        scratch_shapes.append(pltpu.VMEM((TH + 2, W, K), jnp.bfloat16))
    if pool:
        scratch_shapes.append(pltpu.VMEM((TH // 2, W, Cout), jnp.float32))

    return pl.pallas_call(
        kernel,
        out_shape=jax.ShapeDtypeStruct((B, Ho, Wo, Cout), jnp.bfloat16),
        grid=(B, nt),
        in_specs=in_specs,
        out_specs=out_spec,
        scratch_shapes=scratch_shapes,
        compiler_params=pltpu.CompilerParams(
            dimension_semantics=("parallel", "parallel"),
            vmem_limit_bytes=vmem_limit),
    )(x, x, x, w_packed, b)


# ------------- fused heads: convPa/Pb/softmax + convDa/Db/L2-norm -------------
def heads(x, wPa, bPa, wPb, bPb, wDa, bDa, wDb, bDb):
    """Both SuperPoint heads in one kernel (shared input DMA + dx-slab).

    Returns (score_probs, descriptors):
      score_probs: (B, h, w/2, 128) f32 when w is even (two spatial columns
                   packed per 128-lane store), otherwise (B, h, w, 64);
      descriptors: (B, h, w, 256) f32, L2-normalised over channels.
    """
    B, H, W, Cin = x.shape
    K = 3 * Cin
    C1 = wPa.shape[-1]          # 256
    CP = wPb.shape[-1]          # 65
    CD = wDb.shape[-1]          # 256
    pack = (W % 2 == 0)

    bpr = 10 * Cin + 8 * C1 + 8 * CD + 4 * CP + 8 * (CP - 1)
    TH, vmem_limit = _fit_rows(H, W, bpr, even=False)
    nt = H // TH

    def kernel(x1_ref, ht_ref, hb_ref,
               wpa_ref, bpa_ref, wpb_ref, bpb_ref,
               wda_ref, bda_ref, wdb_ref, bdb_ref,
               score_ref, desc_ref, slab_ref, *scratch):
        i = pl.program_id(1)
        _build_dx_slab(slab_ref, x1_ref[0], ht_ref[0], hb_ref[0], i, nt, TH, W, Cin)
        dims = (((2,), (0,)), ((), ()))

        # ---- keypoint head: convPa(3x3)+ReLU -> convPb(1x1) -> softmax ----
        cpa = _slab_conv(slab_ref, wpa_ref, bpa_ref, TH, C1)        # (TH,W,256) f32
        logits = lax.dot_general(cpa.astype(jnp.bfloat16), wpb_ref[...], dims,
                                 preferred_element_type=jnp.float32)
        logits = logits + bpb_ref[...].reshape(1, 1, CP)
        m = jnp.max(logits, axis=-1, keepdims=True)
        e = jnp.exp(logits - m)
        probs = e / jnp.sum(e, axis=-1, keepdims=True)
        probs = probs[:, :, :CP - 1]                                # drop dustbin
        if pack:
            pscr = scratch[0]                                       # (TH, W, 64) f32
            pscr[...] = probs
            # lane-dense packed store: two spatial columns per 128-lane write
            score_ref[0, :, :, 0:CP - 1] = pscr[:, pl.ds(0, W // 2, 2), :]
            score_ref[0, :, :, CP - 1:2 * (CP - 1)] = pscr[:, pl.ds(1, W // 2, 2), :]
        else:
            score_ref[0] = probs

        # ---- descriptor head: convDa(3x3)+ReLU -> convDb(1x1) -> L2 norm ----
        cda = _slab_conv(slab_ref, wda_ref, bda_ref, TH, C1)        # (TH,W,256) f32
        d = lax.dot_general(cda.astype(jnp.bfloat16), wdb_ref[...], dims,
                            preferred_element_type=jnp.float32)
        d = d + bdb_ref[...].reshape(1, 1, CD)
        ss = jnp.sum(d * d, axis=-1, keepdims=True)
        # matches F.normalize(p=2, dim=ch, eps=1e-12): denom = max(||d||, 1e-12)
        desc_ref[0] = d * lax.rsqrt(jnp.maximum(ss, 1e-24))

    in_specs = _halo_in_specs(TH, H, W, Cin) + [
        pl.BlockSpec((3, K, C1), lambda b_, i_: (0, 0, 0)),
        pl.BlockSpec((1, C1), lambda b_, i_: (0, 0)),
        pl.BlockSpec((C1, CP), lambda b_, i_: (0, 0)),
        pl.BlockSpec((1, CP), lambda b_, i_: (0, 0)),
        pl.BlockSpec((3, K, C1), lambda b_, i_: (0, 0, 0)),
        pl.BlockSpec((1, C1), lambda b_, i_: (0, 0)),
        pl.BlockSpec((C1, CD), lambda b_, i_: (0, 0)),
        pl.BlockSpec((1, CD), lambda b_, i_: (0, 0)),
    ]
    if pack:
        score_shape = jax.ShapeDtypeStruct((B, H, W // 2, 2 * (CP - 1)), jnp.float32)
        score_spec = pl.BlockSpec((1, TH, W // 2, 2 * (CP - 1)),
                                  lambda b_, i_: (b_, i_, 0, 0))
    else:
        score_shape = jax.ShapeDtypeStruct((B, H, W, CP - 1), jnp.float32)
        score_spec = pl.BlockSpec((1, TH, W, CP - 1), lambda b_, i_: (b_, i_, 0, 0))
    desc_shape = jax.ShapeDtypeStruct((B, H, W, CD), jnp.float32)
    desc_spec = pl.BlockSpec((1, TH, W, CD), lambda b_, i_: (b_, i_, 0, 0))

    scratch_shapes = [pltpu.VMEM((TH + 2, W, K), jnp.bfloat16)]
    if pack:
        scratch_shapes.append(pltpu.VMEM((TH, W, CP - 1), jnp.float32))

    return pl.pallas_call(
        kernel,
        out_shape=(score_shape, desc_shape),
        grid=(B, nt),
        in_specs=in_specs,
        out_specs=[score_spec, desc_spec],
        scratch_shapes=scratch_shapes,
        compiler_params=pltpu.CompilerParams(
            dimension_semantics=("parallel", "parallel"),
            vmem_limit_bytes=vmem_limit),
    )(x, x, x, wPa, bPa, wPb, bPb, wDa, bDa, wDb, bDb)


# ----------------------------------- simple NMS -----------------------------------
def simple_nms(scores, radius):
    """scores: (B, H, W) >= 0 -> NMS'd scores (same semantics as the torch reference).

    Zero fill outside the image is equivalent to MaxPool2d's -inf padding because
    every pooled value (post-softmax score, 0/1 mask) is >= 0.
    """
    B, H, W = scores.shape
    _, vmem_limit = _budgets()

    shifts = []
    cov = 0
    while cov < radius:
        d = min(2 * cov + 1, radius - cov)
        shifts.append(d)
        cov += d

    def kernel(s_ref, o_ref):
        sc = s_ref[0]
        zeros = jnp.zeros_like(sc)

        # edge masks hoisted out of the roll tree (built once per invocation)
        row_i = lax.broadcasted_iota(jnp.int32, sc.shape, 0)
        col_i = lax.broadcasted_iota(jnp.int32, sc.shape, 1)
        masks = {}
        for ax, idx, n in ((0, row_i, H), (1, col_i, W)):
            for d in shifts:
                masks[(ax, d)] = (idx >= d, idx < n - d)

        def max_window(v, axis):
            n = v.shape[axis]
            for d in shifts:
                ok_f, ok_b = masks[(axis, d)]
                fwd = jnp.where(ok_f, pltpu.roll(v, d, axis), 0.0)
                bwd = jnp.where(ok_b, pltpu.roll(v, n - d, axis), 0.0)
                v = jnp.maximum(v, jnp.maximum(fwd, bwd))
            return v

        def pool(v):
            return max_window(max_window(v, 1), 0)

        max_mask = sc == pool(sc)
        for _ in range(2):
            supp_mask = pool(max_mask.astype(jnp.float32)) > 0.0
            supp_scores = jnp.where(supp_mask, zeros, sc)
            new_max_mask = supp_scores == pool(supp_scores)
            max_mask = max_mask | (new_max_mask & jnp.logical_not(supp_mask))
        o_ref[0] = jnp.where(max_mask, sc, zeros)

    # TODO(synk): for very large frames (1080p+ on v7x) this should be row-tiled
    # with a (radius * #pool-calls)-row halo instead of one (1, H, W) block.
    spec = pl.BlockSpec((1, H, W), lambda i: (i, 0, 0))
    return pl.pallas_call(
        kernel,
        out_shape=jax.ShapeDtypeStruct((B, H, W), jnp.float32),
        grid=(B,),
        in_specs=[spec],
        out_specs=spec,
        compiler_params=pltpu.CompilerParams(
            dimension_semantics=("parallel",),
            vmem_limit_bytes=vmem_limit),
    )(scores)


# --------------------------------- parameters -------------------------------------
def init_params(key):
    # (Cin, Cout, kernel_size) — same shapes as the torch module __init__.
    specs = {
        'conv1a': (1, 64, 3), 'conv1b': (64, 64, 3),
        'conv2a': (64, 64, 3), 'conv2b': (64, 64, 3),
        'conv3a': (64, 128, 3), 'conv3b': (128, 128, 3),
        'conv4a': (128, 128, 3), 'conv4b': (128, 128, 3),
        'convPa': (128, 256, 3), 'convPb': (256, 65, 1),
        'convDa': (128, 256, 3), 'convDb': (256, DESC_DIM, 1),
    }
    params = {}
    keys = jax.random.split(key, len(specs))
    for (name, (cin, cout, k)), kk in zip(specs.items(), keys):
        std = (2.0 / (cin * k * k)) ** 0.5
        shape = (3, 3, cin, cout) if k == 3 else (cin, cout)
        w = jax.random.normal(kk, shape, jnp.float32) * std
        b = jnp.zeros((1, cout), jnp.float32)
        params[name] = (w, b)
    return params


def prepare_params(raw):
    """One-time weight prep: bf16 cast + pack 3x3 taps as (3, 3*Cin, Cout)."""
    prepared = {}
    for name, (w, b) in raw.items():
        if w.ndim == 4:                                  # (3, 3, Cin, Cout)
            _, _, cin, cout = w.shape
            w = w.astype(jnp.bfloat16).reshape(3, 3 * cin, cout)
        else:                                            # (Cin, Cout) 1x1 conv
            w = w.astype(jnp.bfloat16)
        prepared[name] = (w, b.astype(jnp.float32))
    return prepared


# --------------------------------- full forward -----------------------------------
def superpoint_forward(data_nchw, params):
    """data_nchw: (B,1,H,W) f32 -> (scores (B,H,W) f32, descriptors (B,256,H/8,W/8) f32)."""
    x = jnp.transpose(data_nchw, (0, 2, 3, 1))           # NCHW -> NHWC (C=1: free)

    # TODO(synk): conv pairs feeding a pool (1a+1b, 2a+2b, 3a+3b) could be fused
    # into single kernels so the full-res intermediate never leaves VMEM.
    x = conv3x3(x, *params['conv1a'], pool=False)
    x = conv3x3(x, *params['conv1b'], pool=True)          # conv + ReLU + 2x2 pool fused
    x = conv3x3(x, *params['conv2a'], pool=False)
    x = conv3x3(x, *params['conv2b'], pool=True)
    x = conv3x3(x, *params['conv3a'], pool=False)
    x = conv3x3(x, *params['conv3b'], pool=True)
    x = conv3x3(x, *params['conv4a'], pool=False)
    x = conv3x3(x, *params['conv4b'], pool=False)

    # fused keypoint + descriptor heads (one kernel, shared input / slab)
    probs, desc = heads(x, *params['convPa'], *params['convPb'],
                        *params['convDa'], *params['convDb'])

    b, h, wp, cp = probs.shape
    if cp == 128:                                         # unpack lane-dense column pairs
        probs = probs.reshape(b, h, wp, 2, 64).reshape(b, h, wp * 2, 64)
    w = probs.shape[2]
    # TODO(synk): depth-to-space stays a cheap XLA reshape/transpose on the small
    # (B,h,w,64) tensor rather than a fused in-kernel scatter store.
    scores = probs.reshape(b, h, w, 8, 8)
    scores = jnp.transpose(scores, (0, 1, 3, 2, 4)).reshape(b, h * 8, w * 8)
    scores = simple_nms(scores, NMS_RADIUS)

    descriptors = jnp.transpose(desc, (0, 3, 1, 2))       # NHWC -> NCHW
    return scores, descriptors


if __name__ == "__main__":
    key = jax.random.PRNGKey(0)
    pkey, dkey = jax.random.split(key)
    params = prepare_params(init_params(pkey))

    # small input consistent with the module: B=2, 1 channel, 16x16 image
    data = jax.random.uniform(dkey, (2, 1, 16, 16), jnp.float32)

    scores, descriptors = superpoint_forward(data, params)
    jax.block_until_ready((scores, descriptors))

    assert scores.shape == (2, 16, 16), scores.shape
    assert descriptors.shape == (2, DESC_DIM, 2, 2), descriptors.shape
    assert bool(jnp.all(jnp.isfinite(scores))) and bool(jnp.all(jnp.isfinite(descriptors)))
    print("KERNEL_OK")
</pallas_src>

<mosaic_0001>
module attributes {stable_mosaic.version = 11 : i64} {
  func.func @kernel(%arg0: i32, %arg1: i32, %arg2: memref<1x16x16x1xf32, #tpu.memory_space<vmem>>, %arg3: memref<1x1x16x1xf32, #tpu.memory_space<vmem>>, %arg4: memref<1x1x16x1xf32, #tpu.memory_space<vmem>>, %arg5: memref<3x3x64xbf16, #tpu.memory_space<vmem>>, %arg6: memref<1x64xf32, #tpu.memory_space<vmem>>, %arg7: memref<1x16x16x64xbf16, #tpu.memory_space<vmem>>) attributes {dimension_semantics = [#tpu.dimension_semantics<parallel>, #tpu.dimension_semantics<parallel>], iteration_bounds = array<i64: 2, 1>, scalar_prefetch = 0 : i64, scratch_operands = 0 : i64, tpu.core_type = #tpu.core_type<tc>, window_params = [{transform_indices = @transform_0, window_bounds = array<i64: 1, 16, 16, 1>}, {transform_indices = @transform_1, window_bounds = array<i64: 1, 1, 16, 1>}, {transform_indices = @transform_2, window_bounds = array<i64: 1, 1, 16, 1>}, {pipeline_mode = #tpu.pipeline_mode<synchronous>, transform_indices = @transform_3, window_bounds = array<i64: 3, 3, 64>}, {pipeline_mode = #tpu.pipeline_mode<synchronous>, transform_indices = @transform_4, window_bounds = array<i64: 1, 64>}, {transform_indices = @transform_5, window_bounds = array<i64: 1, 16, 16, 64>}]} {
    %c0_i32 = arith.constant 0 : i32
    %0 = arith.cmpi eq, %arg1, %c0_i32 : i32
    %cst = arith.constant 0.000000e+00 : f32
    %cst_0 = arith.constant 1.000000e+00 : f32
    %1 = arith.select %0, %cst, %cst_0 : f32
    %c0_i32_1 = arith.constant 0 : i32
    %2 = arith.cmpi eq, %arg1, %c0_i32_1 : i32
    %cst_2 = arith.constant 0.000000e+00 : f32
    %cst_3 = arith.constant 1.000000e+00 : f32
    %3 = arith.select %2, %cst_2, %cst_3 : f32
    %c0 = arith.constant 0 : index
    %c0_4 = arith.constant 0 : index
    %c0_5 = arith.constant 0 : index
    %c0_6 = arith.constant 0 : index
    %4 = vector.load %arg2[%c0, %c0_4, %c0_5, %c0_6] : memref<1x16x16x1xf32, #tpu.memory_space<vmem>>, vector<1x16x16x1xf32>
    %5 = vector.shape_cast %4 : vector<1x16x16x1xf32> to vector<16x16x1xf32>
    %c0_7 = arith.constant 0 : index
    %c0_8 = arith.constant 0 : index
    %c0_9 = arith.constant 0 : index
    %c0_10 = arith.constant 0 : index
    %6 = vector.load %arg3[%c0_7, %c0_8, %c0_9, %c0_10] : memref<1x1x16x1xf32, #tpu.memory_space<vmem>>, vector<1x1x16x1xf32>
    %7 = vector.shape_cast %6 : vector<1x1x16x1xf32> to vector<1x16x1xf32>
    %8 = vector.broadcast %1 : f32 to vector<1x16x1xf32>
    %9 = arith.mulf %7, %8 : vector<1x16x1xf32>
    %c0_11 = arith.constant 0 : index
    %c0_12 = arith.constant 0 : index
    %c0_13 = arith.constant 0 : index
    %c0_14 = arith.constant 0 : index
    %10 = vector.load %arg4[%c0_11, %c0_12, %c0_13, %c0_14] : memref<1x1x16x1xf32, #tpu.memory_space<vmem>>, vector<1x1x16x1xf32>
    %11 = vector.shape_cast %10 : vector<1x1x16x1xf32> to vector<1x16x1xf32>
    %12 = vector.broadcast %3 : f32 to vector<1x16x1xf32>
    %13 = arith.mulf %11, %12 : vector<1x16x1xf32>
    %14 = tpu.concatenate %9, %5, %13 in 0 : vector<1x16x1xf32>, vector<16x16x1xf32>, vector<1x16x1xf32> -> vector<18x16x1xf32>
    %cst_15 = arith.constant 0.000000e+00 : f32
    %15 = vector.broadcast %cst_15 : f32 to vector<18x1x1xf32>
    %16 = tpu.concatenate %15, %14, %15 in 1 : vector<18x1x1xf32>, vector<18x16x1xf32>, vector<18x1x1xf32> -> vector<18x18x1xf32>
    %cst_16 = arith.constant 0.000000e+00 : f32
    %17 = vector.broadcast %cst_16 : f32 to vector<16x16x64xf32>
    %18 = vector.extract_strided_slice %16 {offsets = [0, 0, 0], sizes = [16, 16, 1], strides = [1, 1, 1]} : vector<18x18x1xf32> to vector<16x16x1xf32>
    %c0_17 = arith.constant 0 : index
    %c0_18 = arith.constant 0 : index
    %c0_19 = arith.constant 0 : index
    %19 = vector.load %arg5[%c0_17, %c0_18, %c0_19] : memref<3x3x64xbf16, #tpu.memory_space<vmem>>, vector<1x1x64xbf16>
    %20 = vector.shape_cast %19 : vector<1x1x64xbf16> to vector<1x64xbf16>
    %21 = arith.extf %20 : vector<1x64xbf16> to vector<1x64xf32>
    %22 = vector.shape_cast %21 : vector<1x64xf32> to vector<1x1x64xf32>
    %23 = vector.broadcast %18 : vector<16x16x1xf32> to vector<16x16x64xf32>
    %24 = vector.broadcast %22 : vector<1x1x64xf32> to vector<16x16x64xf32>
    %25 = arith.mulf %23, %24 : vector<16x16x64xf32>
    %26 = arith.addf %17, %25 : vector<16x16x64xf32>
    %27 = vector.extract_strided_slice %16 {offsets = [0, 1, 0], sizes = [16, 16, 1], strides = [1, 1, 1]} : vector<18x18x1xf32> to vector<16x16x1xf32>
    %c0_20 = arith.constant 0 : index
    %c1 = arith.constant 1 : index
    %c0_21 = arith.constant 0 : index
    %28 = vector.load %arg5[%c0_20, %c1, %c0_21] : memref<3x3x64xbf16, #tpu.memory_space<vmem>>, vector<1x1x64xbf16>
    %29 = vector.shape_cast %28 : vector<1x1x64xbf16> to vector<1x64xbf16>
    %30 = arith.extf %29 : vector<1x64xbf16> to vector<1x64xf32>
    %31 = vector.shape_cast %30 : vector<1x64xf32> to vector<1x1x64xf32>
    %32 = vector.broadcast %27 : vector<16x16x1xf32> to vector<16x16x64xf32>
    %33 = vector.broadcast %31 : vector<1x1x64xf32> to vector<16x16x64xf32>
    %34 = arith.mulf %32, %33 : vector<16x16x64xf32>
    %35 = arith.addf %26, %34 : vector<16x16x64xf32>
    %36 = vector.extract_strided_slice %16 {offsets = [0, 2, 0], sizes = [16, 16, 1], strides = [1, 1, 1]} : vector<18x18x1xf32> to vector<16x16x1xf32>
    %c0_22 = arith.constant 0 : index
    %c2 = arith.constant 2 : index
    %c0_23 = arith.constant 0 : index
    %37 = vector.load %arg5[%c0_22, %c2, %c0_23] : memref<3x3x64xbf16, #tpu.memory_space<vmem>>, vector<1x1x64xbf16>
    %38 = vector.shape_cast %37 : vector<1x1x64xbf16> to vector<1x64xbf16>
    %39 = arith.extf %38 : vector<1x64xbf16> to vector<1x64xf32>
    %40 = vector.shape_cast %39 : vector<1x64xf32> to vector<1x1x64xf32>
    %41 = vector.broadcast %36 : vector<16x16x1xf32> to vector<16x16x64xf32>
    %42 = vector.broadcast %40 : vector<1x1x64xf32> to vector<16x16x64xf32>
    %43 = arith.mulf %41, %42 : vector<16x16x64xf32>
    %44 = arith.addf %35, %43 : vector<16x16x64xf32>
    %45 = vector.extract_strided_slice %16 {offsets = [1, 0, 0], sizes = [16, 16, 1], strides = [1, 1, 1]} : vector<18x18x1xf32> to vector<16x16x1xf32>
    %c1_24 = arith.constant 1 : index
    %c0_25 = arith.constant 0 : index
    %c0_26 = arith.constant 0 : index
    %46 = vector.load %arg5[%c1_24, %c0_25, %c0_26] : memref<3x3x64xbf16, #tpu.memory_space<vmem>>, vector<1x1x64xbf16>
    %47 = vector.shape_cast %46 : vector<1x1x64xbf16> to vector<1x64xbf16>
    %48 = arith.extf %47 : vector<1x64xbf16> to vector<1x64xf32>
    %49 = vector.shape_cast %48 : vector<1x64xf32> to vector<1x1x64xf32>
    %50 = vector.broadcast %45 : vector<16x16x1xf32> to vector<16x16x64xf32>
    %51 = vector.broadcast %49 : vector<1x1x64xf32> to vector<16x16x64xf32>
    %52 = arith.mulf %50, %51 : vector<16x16x64xf32>
    %53 = arith.addf %44, %52 : vector<16x16x64xf32>
    %54 = vector.extract_strided_slice %16 {offsets = [1, 1, 0], sizes = [16, 16, 1], strides = [1, 1, 1]} : vector<18x18x1xf32> to vector<16x16x1xf32>
    %c1_27 = arith.constant 1 : index
    %c1_28 = arith.constant 1 : index
    %c0_29 = arith.constant 0 : index
    %55 = vector.load %arg5[%c1_27, %c1_28, %c0_29] : memref<3x3x64xbf16, #tpu.memory_space<vmem>>, vector<1x1x64xbf16>
    %56 = vector.shape_cast %55 : vector<1x1x64xbf16> to vector<1x64xbf16>
    %57 = arith.extf %56 : vector<1x64xbf16> to vector<1x64xf32>
    %58 = vector.shape_cast %57 : vector<1x64xf32> to vector<1x1x64xf32>
    %59 = vector.broadcast %54 : vector<16x16x1xf32> to vector<16x16x64xf32>
    %60 = vector.broadcast %58 : vector<1x1x64xf32> to vector<16x16x64xf32>
    %61 = arith.mulf %59, %60 : vector<16x16x64xf32>
    %62 = arith.addf %53, %61 : vector<16x16x64xf32>
    %63 = vector.extract_strided_slice %16 {offsets = [1, 2, 0], sizes = [16, 16, 1], strides = [1, 1, 1]} : vector<18x18x1xf32> to vector<16x16x1xf32>
    %c1_30 = arith.constant 1 : index
    %c2_31 = arith.constant 2 : index
    %c0_32 = arith.constant 0 : index
    %64 = vector.load %arg5[%c1_30, %c2_31, %c0_32] : memref<3x3x64xbf16, #tpu.memory_space<vmem>>, vector<1x1x64xbf16>
    %65 = vector.shape_cast %64 : vector<1x1x64xbf16> to vector<1x64xbf16>
    %66 = arith.extf %65 : vector<1x64xbf16> to vector<1x64xf32>
    %67 = vector.shape_cast %66 : vector<1x64xf32> to vector<1x1x64xf32>
    %68 = vector.broadcast %63 : vector<16x16x1xf32> to vector<16x16x64xf32>
    %69 = vector.broadcast %67 : vector<1x1x64xf32> to vector<16x16x64xf32>
    %70 = arith.mulf %68, %69 : vector<16x16x64xf32>
    %71 = arith.addf %62, %70 : vector<16x16x64xf32>
    %72 = vector.extract_strided_slice %16 {offsets = [2, 0, 0], sizes = [16, 16, 1], strides = [1, 1, 1]} : vector<18x18x1xf32> to vector<16x16x1xf32>
    %c2_33 = arith.constant 2 : index
    %c0_34 = arith.constant 0 : index
    %c0_35 = arith.constant 0 : index
    %73 = vector.load %arg5[%c2_33, %c0_34, %c0_35] : memref<3x3x64xbf16, #tpu.memory_space<vmem>>, vector<1x1x64xbf16>
    %74 = vector.shape_cast %73 : vector<1x1x64xbf16> to vector<1x64xbf16>
    %75 = arith.extf %74 : vector<1x64xbf16> to vector<1x64xf32>
    %76 = vector.shape_cast %75 : vector<1x64xf32> to vector<1x1x64xf32>
    %77 = vector.broadcast %72 : vector<16x16x1xf32> to vector<16x16x64xf32>
    %78 = vector.broadcast %76 : vector<1x1x64xf32> to vector<16x16x64xf32>
    %79 = arith.mulf %77, %78 : vector<16x16x64xf32>
    %80 = arith.addf %71, %79 : vector<16x16x64xf32>
    %81 = vector.extract_strided_slice %16 {offsets = [2, 1, 0], sizes = [16, 16, 1], strides = [1, 1, 1]} : vector<18x18x1xf32> to vector<16x16x1xf32>
    %c2_36 = arith.constant 2 : index
    %c1_37 = arith.constant 1 : index
    %c0_38 = arith.constant 0 : index
    %82 = vector.load %arg5[%c2_36, %c1_37, %c0_38] : memref<3x3x64xbf16, #tpu.memory_space<vmem>>, vector<1x1x64xbf16>
    %83 = vector.shape_cast %82 : vector<1x1x64xbf16> to vector<1x64xbf16>
    %84 = arith.extf %83 : vector<1x64xbf16> to vector<1x64xf32>
    %85 = vector.shape_cast %84 : vector<1x64xf32> to vector<1x1x64xf32>
    %86 = vector.broadcast %81 : vector<16x16x1xf32> to vector<16x16x64xf32>
    %87 = vector.broadcast %85 : vector<1x1x64xf32> to vector<16x16x64xf32>
    %88 = arith.mulf %86, %87 : vector<16x16x64xf32>
    %89 = arith.addf %80, %88 : vector<16x16x64xf32>
    %90 = vector.extract_strided_slice %16 {offsets = [2, 2, 0], sizes = [16, 16, 1], strides = [1, 1, 1]} : vector<18x18x1xf32> to vector<16x16x1xf32>
    %c2_39 = arith.constant 2 : index
    %c2_40 = arith.constant 2 : index
    %c0_41 = arith.constant 0 : index
    %91 = vector.load %arg5[%c2_39, %c2_40, %c0_41] : memref<3x3x64xbf16, #tpu.memory_space<vmem>>, vector<1x1x64xbf16>
    %92 = vector.shape_cast %91 : vector<1x1x64xbf16> to vector<1x64xbf16>
    %93 = arith.extf %92 : vector<1x64xbf16> to vector<1x64xf32>
    %94 = vector.shape_cast %93 : vector<1x64xf32> to vector<1x1x64xf32>
    %95 = vector.broadcast %90 : vector<16x16x1xf32> to vector<16x16x64xf32>
    %96 = vector.broadcast %94 : vector<1x1x64xf32> to vector<16x16x64xf32>
    %97 = arith.mulf %95, %96 : vector<16x16x64xf32>
    %98 = arith.addf %89, %97 : vector<16x16x64xf32>
    %c0_42 = arith.constant 0 : index
    %c0_43 = arith.constant 0 : index
    %99 = vector.load %arg6[%c0_42, %c0_43] : memref<1x64xf32, #tpu.memory_space<vmem>>, vector<1x64xf32>
    %100 = vector.shape_cast %99 : vector<1x64xf32> to vector<1x1x64xf32>
    %101 = vector.broadcast %100 : vector<1x1x64xf32> to vector<16x16x64xf32>
    %102 = arith.addf %98, %101 : vector<16x16x64xf32>
    %cst_44 = arith.constant 0.000000e+00 : f32
    %103 = vector.broadcast %cst_44 : f32 to vector<16x16x64xf32>
    %104 = arith.maximumf %102, %103 : vector<16x16x64xf32>
    %105 = arith.truncf %104 : vector<16x16x64xf32> to vector<16x16x64xbf16>
    %c0_45 = arith.constant 0 : index
    %c0_46 = arith.constant 0 : index
    %c0_47 = arith.constant 0 : index
    %c0_48 = arith.constant 0 : index
    %106 = vector.load %arg7[%c0_45, %c0_46, %c0_47, %c0_48] : memref<1x16x16x64xbf16, #tpu.memory_space<vmem>>, vector<1x16x16x64xbf16>
    %107 = vector.shape_cast %106 : vector<1x16x16x64xbf16> to vector<16x16x64xbf16>
    %108 = vector.shape_cast %105 : vector<16x16x64xbf16> to vector<1x16x16x64xbf16>
    tpu.vector_store %arg7[%c0_45, %c0_46, %c0_47, %c0_48], %108 {strides = array<i32>} : memref<1x16x16x64xbf16, #tpu.memory_space<vmem>>, vector<1x16x16x64xbf16>,
    return
  }
  func.func @transform_0(%arg0: i32, %arg1: i32) -> (i32, i32, i32, i32) {
    %c0_i32 = arith.constant 0 : i32
    %c0_i32_0 = arith.constant 0 : i32
    %c0_i32_1 = arith.constant 0 : i32
    return %arg0, %arg1, %c0_i32, %c0_i32_0 : i32, i32, i32, i32
  }
  func.func @transform_1(%arg0: i32, %arg1: i32) -> (i32, i32, i32, i32) {
    %c16_i32 = arith.constant 16 : i32
    %0 = arith.muli %arg1, %c16_i32 : i32
    %c1_i32 = arith.constant 1 : i32
    %1 = arith.subi %0, %c1_i32 : i32
    %c0_i32 = arith.constant 0 : i32
    %2 = arith.maxsi %1, %c0_i32 : i32
    %c0_i32_0 = arith.constant 0 : i32
    %c0_i32_1 = arith.constant 0 : i32
    %c0_i32_2 = arith.constant 0 : i32
    return %arg0, %2, %c0_i32_0, %c0_i32_1 : i32, i32, i32, i32
  }
  func.func @transform_2(%arg0: i32, %arg1: i32) -> (i32, i32, i32, i32) {
    %c1_i32 = arith.constant 1 : i32
    %0 = arith.addi %arg1, %c1_i32 : i32
    %c16_i32 = arith.constant 16 : i32
    %1 = arith.muli %0, %c16_i32 : i32
    %c15_i32 = arith.constant 15 : i32
    %2 = arith.minsi %1, %c15_i32 : i32
    %c0_i32 = arith.constant 0 : i32
    %c0_i32_0 = arith.constant 0 : i32
    %c0_i32_1 = arith.constant 0 : i32
    return %arg0, %2, %c0_i32, %c0_i32_0 : i32, i32, i32, i32
  }
  func.func @transform_3(%arg0: i32, %arg1: i32) -> (i32, i32, i32) {
    %c0_i32 = arith.constant 0 : i32
    %c0_i32_0 = arith.constant 0 : i32
    %c0_i32_1 = arith.constant 0 : i32
    %c0_i32_2 = arith.constant 0 : i32
    return %c0_i32, %c0_i32_0, %c0_i32_1 : i32, i32, i32
  }
  func.func @transform_4(%arg0: i32, %arg1: i32) -> (i32, i32) {
    %c0_i32 = arith.constant 0 : i32
    %c0_i32_0 = arith.constant 0 : i32
    %c0_i32_1 = arith.constant 0 : i32
    return %c0_i32, %c0_i32_0 : i32, i32
  }
  func.func @transform_5(%arg0: i32, %arg1: i32) -> (i32, i32, i32, i32) {
    %c0_i32 = arith.constant 0 : i32
    %c0_i32_0 = arith.constant 0 : i32
    %c0_i32_1 = arith.constant 0 : i32
    return %arg0, %arg1, %c0_i32, %c0_i32_0 : i32, i32, i32, i32
  }
}

</mosaic_0001>

<llo_original>
// kernel: tpu_custom_call.1
$region0: #{tpu_custom_call.1}
  #allocation0 [shape = 'u32[]', space=smem, size = 0x4, offset = 0x4, fixed_abs, tag = 'smem constant byte address 0x4 - core index']
  #allocation1 [shape = 'u32[72,128]{1,0:T(1,128)}', space=vmem, size = 0x9000, scoped, tag = 'internal scratch']
  %s0 = inlined_call_operand.vmem [shape: f32[2,16,16,1], index: 0, kind: input, shape index: {}]
  %s1 = inlined_call_operand.vmem [shape: f32[2,16,16,1], index: 1, kind: input, shape index: {}]
  %s2 = inlined_call_operand.vmem [shape: f32[2,16,16,1], index: 2, kind: input, shape index: {}]
  %s3 = inlined_call_operand.vmem [shape: bf16[3,3,64], index: 3, kind: input, shape index: {}]
  %s4 = inlined_call_operand.vmem [shape: f32[1,64], index: 4, kind: input, shape index: {}]
  %s5 = inlined_call_operand.hbm [shape: bf16[2,16,16,64], index: 5, kind: output, shape index: {}]
  %s6 = sld [smem:[#allocation0]]
  $region53: #{tpu_custom_call.1} parent=0
    _
  %s8 = ssub.s32 1, %s6
  %s9 = scalar_select 0, %s8, %s6
  $region1: #{tpu_custom_call.1} parent=0
    #allocation2 [shape = 'u8[131072]{0}', space=vmem, size = 0x20000, scoped, tag = 'output window, operand 0']
    #allocation3 [shape = 's32[2]{0}', space=sflag, size = 0x8, scoped, tag = 'scoped memory for tpu_custom_call.1']
    %10 = vsyncpa [#allocation3], 0
    %s11 = scalar_lea.sflag [#allocation3], 1
    %12 = vsyncpa %s11, 0
    loop: start=0, step=1, limit=4
    $region2: #{tpu_custom_call.1} parent=1 // loop_pre_header
      _
    $region3: #{tpu_custom_call.1} parent=1 // loop_header
      %s14 = sphi 0, %s18
      %p15 = scmp.ge.s32.totalorder %s14, 4
      %s21 = sphi 0, %s33
      %s22 = sphi 0, %s29
      %s23 = sphi 0, %s21
      %s24 = sphi 0, %s22
      %s25 = sphi 0, %s23
      %s26 = sphi 0, %s24
      %s38 = sphi 0, %s40
      %s41 = sphi 0, %s38
      %s42 = sphi 0, %s41
      %s58 = sphi 0, %s42
      %s74 = sphi 0, %s76
      %s77 = sphi 0, %s74
      %s78 = sphi 0, %s77
      %s94 = sphi 0, %s78
      %s110 = sphi 0, %s112
      %s113 = sphi 0, %s110
      %s114 = sphi 0, %s113
      %s130 = sphi 0, %s114
      %s134 = sphi 0, %s134
      %s136 = sphi 0, %s134
      %s137 = sphi 0, %s136
      %s151 = sphi 0, %s137
      %s155 = sphi 0, %s155
      %s157 = sphi 0, %s155
      %s158 = sphi 0, %s157
      %s172 = sphi 0, %s158
      %s180 = sphi 0, %s182
      %s183 = sphi 0, %s180
      %s184 = sphi 0, %s183
      %s200 = sphi 0, %s184
    $region4: #{tpu_custom_call.1} parent=1 // loop_header_branch
      %17 = sbr.rel (%p15) target = $region8
    $region5: #{tpu_custom_call.1} parent=1 // loop_body
      %s19 = ssub.s32 %s14, 1
      %s20 = ssub.s32 %s14, 2
      %s27 = sadd.s32 1, %s22
      %p28 = scmp.ge.s32.totalorder %s27, 1
      %s29 = scalar_select %p28, 0, %s27
      %s30 = sadd.s32 1, %s21
      %s31 = scalar_select %p28, %s30, %s21
      %p32 = scmp.ge.s32.totalorder %s31, 2
      %s33 = scalar_select %p32, 0, %s31
      %s34 = ssub.s32 %s21, %s33
      %s35 = ssub.s32 %s22, %s29
      %s36 = sor.u32 %s34, %s35
      %p37 = scmp.eq.s32.totalorder %s36, 0
      %s39 = sadd.s32 %s38, 1
      %s40 = scalar_select %p37, %s38, %s39
      %p43 = pneg %p37
      %p44 = scmp.eq.s32.totalorder %s14, 1
      %p45 = por %p43, %p44
      %p46 = scmp.ne.s32.totalorder %s38, %s41
      %p47 = scmp.eq.s32.totalorder %s14, 0
      %p48 = por %p46, %p47
      %p49 = scmp.ne.s32.totalorder %s38, %s41
      %p50 = scmp.eq.s32.totalorder %s19, 1
      %p51 = por %p49, %p50
      %p52 = scmp.ne.s32.totalorder %s41, %s42
      %p53 = scmp.eq.s32.totalorder %s19, 0
      %p54 = por %p52, %p53
      %p55 = scmp.ne.s32.totalorder %s41, %s42
      %p56 = scmp.eq.s32.totalorder %s20, 1
      %p57 = por %p55, %p56
      %p59 = scmp.ne.s32.totalorder %s42, %s58
      %p60 = scmp.eq.s32.totalorder %s20, 0
      %p61 = por %p59, %p60
      %s62 = smul.u32 %s22, 16
      %s63 = ssub.s32 %s62, 1
      %p64 = scmp.gt.s32.totalorder %s63, 0
      %s65 = scalar_select %p64, %s63, 0
      %s66 = smul.u32 %s29, 16
      %s67 = ssub.s32 %s66, 1
      %p68 = scmp.gt.s32.totalorder %s67, 0
      %s69 = scalar_select %p68, %s67, 0
      %s70 = ssub.s32 %s21, %s33
      %s71 = ssub.s32 %s65, %s69
      %s72 = sor.u32 %s70, %s71
      %p73 = scmp.eq.s32.totalorder %s72, 0
      %s75 = sadd.s32 %s74, 1
      %s76 = scalar_select %p73, %s74, %s75
      %p79 = pneg %p73
      %p80 = scmp.eq.s32.totalorder %s14, 1
      %p81 = por %p79, %p80
      %p82 = scmp.ne.s32.totalorder %s74, %s77
      %p83 = scmp.eq.s32.totalorder %s14, 0
      %p84 = por %p82, %p83
      %p85 = scmp.ne.s32.totalorder %s74, %s77
      %p86 = scmp.eq.s32.totalorder %s19, 1
      %p87 = por %p85, %p86
      %p88 = scmp.ne.s32.totalorder %s77, %s78
      %p89 = scmp.eq.s32.totalorder %s19, 0
      %p90 = por %p88, %p89
      %p91 = scmp.ne.s32.totalorder %s77, %s78
      %p92 = scmp.eq.s32.totalorder %s20, 1
      %p93 = por %p91, %p92
      %p95 = scmp.ne.s32.totalorder %s78, %s94
      %p96 = scmp.eq.s32.totalorder %s20, 0
      %p97 = por %p95, %p96
      %s98 = sadd.s32 %s22, 1
      %s99 = smul.u32 %s98, 16
      %p100 = scmp.lt.s32.totalorder %s99, 15
      %s101 = scalar_select %p100, %s99, 15
      %s102 = sadd.s32 %s29, 1
      %s103 = smul.u32 %s102, 16
      %p104 = scmp.lt.s32.totalorder %s103, 15
      %s105 = scalar_select %p104, %s103, 15
      %s106 = ssub.s32 %s21, %s33
      %s107 = ssub.s32 %s101, %s105
      %s108 = sor.u32 %s106, %s107
      %p109 = scmp.eq.s32.totalorder %s108, 0
      %s111 = sadd.s32 %s110, 1
      %s112 = scalar_select %p109, %s110, %s111
      %p115 = pneg %p109
      %p116 = scmp.eq.s32.totalorder %s14, 1
      %p117 = por %p115, %p116
      %p118 = scmp.ne.s32.totalorder %s110, %s113
      %p119 = scmp.eq.s32.totalorder %s14, 0
      %p120 = por %p118, %p119
      %p121 = scmp.ne.s32.totalorder %s110, %s113
      %p122 = scmp.eq.s32.totalorder %s19, 1
      %p123 = por %p121, %p122
      %p124 = scmp.ne.s32.totalorder %s113, %s114
      %p125 = scmp.eq.s32.totalorder %s19, 0
      %p126 = por %p124, %p125
      %p127 = scmp.ne.s32.totalorder %s113, %s114
      %p128 = scmp.eq.s32.totalorder %s20, 1
      %p129 = por %p127, %p128
      %p131 = scmp.ne.s32.totalorder %s114, %s130
      %p132 = scmp.eq.s32.totalorder %s20, 0
      %p133 = por %p131, %p132
      %s135 = sadd.s32 %s134, 1
      %p138 = scmp.eq.s32.totalorder %s14, 1
      %p139 = scmp.ne.s32.totalorder %s134, %s136
      %p140 = scmp.eq.s32.totalorder %s14, 0
      %p141 = por %p139, %p140
      %p142 = scmp.ne.s32.totalorder %s134, %s136
      %p143 = scmp.eq.s32.totalorder %s19, 1
      %p144 = por %p142, %p143
      %p145 = scmp.ne.s32.totalorder %s136, %s137
      %p146 = scmp.eq.s32.totalorder %s19, 0
      %p147 = por %p145, %p146
      %p148 = scmp.ne.s32.totalorder %s136, %s137
      %p149 = scmp.eq.s32.totalorder %s20, 1
      %p150 = por %p148, %p149
      %p152 = scmp.ne.s32.totalorder %s137, %s151
      %p153 = scmp.eq.s32.totalorder %s20, 0
      %p154 = por %p152, %p153
      %s156 = sadd.s32 %s155, 1
      %p159 = scmp.eq.s32.totalorder %s14, 1
      %p160 = scmp.ne.s32.totalorder %s155, %s157
      %p161 = scmp.eq.s32.totalorder %s14, 0
      %p162 = por %p160, %p161
      %p163 = scmp.ne.s32.totalorder %s155, %s157
      %p164 = scmp.eq.s32.totalorder %s19, 1
      %p165 = por %p163, %p164
      %p166 = scmp.ne.s32.totalorder %s157, %s158
      %p167 = scmp.eq.s32.totalorder %s19, 0
      %p168 = por %p166, %p167
      %p169 = scmp.ne.s32.totalorder %s157, %s158
      %p170 = scmp.eq.s32.totalorder %s20, 1
      %p171 = por %p169, %p170
      %p173 = scmp.ne.s32.totalorder %s158, %s172
      %p174 = scmp.eq.s32.totalorder %s20, 0
      %p175 = por %p173, %p174
      %s176 = ssub.s32 %s21, %s33
      %s177 = ssub.s32 %s22, %s29
      %s178 = sor.u32 %s176, %s177
      %p179 = scmp.eq.s32.totalorder %s178, 0
      %s181 = sadd.s32 %s180, 1
      %s182 = scalar_select %p179, %s180, %s181
      %p185 = pneg %p179
      %p186 = scmp.eq.s32.totalorder %s14, 1
      %p187 = por %p185, %p186
      %p188 = scmp.ne.s32.totalorder %s180, %s183
      %p189 = scmp.eq.s32.totalorder %s14, 0
      %p190 = por %p188, %p189
      %p191 = scmp.ne.s32.totalorder %s180, %s183
      %p192 = scmp.eq.s32.totalorder %s19, 1
      %p193 = por %p191, %p192
      %p194 = scmp.ne.s32.totalorder %s183, %s184
      %p195 = scmp.eq.s32.totalorder %s19, 0
      %p196 = por %p194, %p195
      %p197 = scmp.ne.s32.totalorder %s183, %s184
      %p198 = scmp.eq.s32.totalorder %s20, 1
      %p199 = por %p197, %p198
      %p201 = scmp.ne.s32.totalorder %s184, %s200
      %p202 = scmp.eq.s32.totalorder %s20, 0
      %p203 = por %p201, %p202
      %p204 = scmp.le.s32.totalorder 1, %s14
      %p205 = scmp.lt.s32.totalorder %s14, 3
      %p206 = pnand %p204, %p205
      %p207 = pneg %p206
      // Predicated region
      $region9: #{tpu_custom_call.1} parent=5 // pred_check
        _
      $region10: #{tpu_custom_call.1} parent=5 // pred_check_branch
        %209 = sbr.rel (%p206) target = $region12
      $region11: #{tpu_custom_call.1} parent=5 // pred_region
        %s210 = ssub.s32 %s14, 1
        // Predicated region
        $region13: #{tpu_custom_call.1} parent=11 // pred_check
          %p211 = pneg %p147
        $region14: #{tpu_custom_call.1} parent=11 // pred_check_branch
          %213 = sbr.rel (%p211) target = $region16
        $region15: #{tpu_custom_call.1} parent=11 // pred_region
          _
        $region16: #{tpu_custom_call.1} parent=11 // pred_fallthru
          _
        // Predicated region
        $region17: #{tpu_custom_call.1} parent=11 // pred_check
          %p214 = pneg %p168
        $region18: #{tpu_custom_call.1} parent=11 // pred_check_branch
          %216 = sbr.rel (%p214) target = $region20
        $region19: #{tpu_custom_call.1} parent=11 // pred_region
          _
        $region20: #{tpu_custom_call.1} parent=11 // pred_fallthru
          _
      $region12: #{tpu_custom_call.1} parent=5 // pred_fallthru
        _
      %p217 = scmp.lt.s32.totalorder %s14, 2
      // Predicated region
      $region21: #{tpu_custom_call.1} parent=5 // pred_check
        %p218 = pneg %p217
      $region22: #{tpu_custom_call.1} parent=5 // pred_check_branch
        %220 = sbr.rel (%p218) target = $region24
      $region23: #{tpu_custom_call.1} parent=5 // pred_region
        // Predicated region
        $region25: #{tpu_custom_call.1} parent=23 // pred_check
          %p221 = pneg %p48
        $region26: #{tpu_custom_call.1} parent=23 // pred_check_branch
          %223 = sbr.rel (%p221) target = $region28
        $region27: #{tpu_custom_call.1} parent=23 // pred_region
          %s224 = smul.u32 16, %s22
          %p225 = scmp.lt.s32.totalorder %s21, 1
          %s226 = scalar_select %p225, %s21, 1
          %p227 = scmp.lt.s32.totalorder %s224, 15
          %s228 = scalar_select %p227, %s224, 15
          %s229 = smul.addr %s228, 2
          %s230 = smul.addr %s226, 32
          %s231 = sadd.s32 %s229, %s230
          %s232 = smul.addr %s231, 8
          %s233 = scalar_lea.vmem %s0, %s232
          %s234 = smul.u32 16, %s22
        $region28: #{tpu_custom_call.1} parent=23 // pred_fallthru
          _
        // Predicated region
        $region29: #{tpu_custom_call.1} parent=23 // pred_check
          %p235 = pneg %p84
        $region30: #{tpu_custom_call.1} parent=23 // pred_check_branch
          %237 = sbr.rel (%p235) target = $region32
        $region31: #{tpu_custom_call.1} parent=23 // pred_region
          %s238 = smul.u32 %s22, 16
          %s239 = ssub.s32 %s238, 1
          %p240 = scmp.gt.s32.totalorder %s239, 0
          %s241 = scalar_select %p240, %s239, 0
          %p242 = scmp.lt.s32.totalorder %s21, 1
          %s243 = scalar_select %p242, %s21, 1
          %p244 = scmp.lt.s32.totalorder %s241, 15
          %s245 = scalar_select %p244, %s241, 15
          %s246 = smul.addr %s245, 2
          %s247 = smul.addr %s243, 32
          %s248 = sadd.s32 %s246, %s247
          %s249 = smul.addr %s248, 8
          %s250 = scalar_lea.vmem %s1, %s249
          %s251 = smul.u32 %s22, 16
          %s252 = ssub.s32 %s251, 1
          %p253 = scmp.gt.s32.totalorder %s252, 0
          %s254 = scalar_select %p253, %s252, 0
        $region32: #{tpu_custom_call.1} parent=23 // pred_fallthru
          _
        // Predicated region
        $region33: #{tpu_custom_call.1} parent=23 // pred_check
          %p255 = pneg %p120
        $region34: #{tpu_custom_call.1} parent=23 // pred_check_branch
          %257 = sbr.rel (%p255) target = $region36
        $region35: #{tpu_custom_call.1} parent=23 // pred_region
          %s258 = sadd.s32 %s22, 1
          %s259 = smul.u32 %s258, 16
          %p260 = scmp.lt.s32.totalorder %s259, 15
          %s261 = scalar_select %p260, %s259, 15
          %p262 = scmp.lt.s32.totalorder %s21, 1
          %s263 = scalar_select %p262, %s21, 1
          %p264 = scmp.lt.s32.totalorder %s261, 15
          %s265 = scalar_select %p264, %s261, 15
          %s266 = smul.addr %s265, 2
          %s267 = smul.addr %s263, 32
          %s268 = sadd.s32 %s266, %s267
          %s269 = smul.addr %s268, 8
          %s270 = scalar_lea.vmem %s2, %s269
          %s271 = sadd.s32 %s22, 1
          %s272 = smul.u32 %s271, 16
          %p273 = scmp.lt.s32.totalorder %s272, 15
          %s274 = scalar_select %p273, %s272, 15
        $region36: #{tpu_custom_call.1} parent=23 // pred_fallthru
          _
      $region24: #{tpu_custom_call.1} parent=5 // pred_fallthru
        _
      %p275 = scmp.le.s32.totalorder 1, %s14
      %p276 = scmp.lt.s32.totalorder %s14, 3
      %p277 = pnand %p275, %p276
      %p278 = pneg %p277
      // Predicated region
      $region37: #{tpu_custom_call.1} parent=5 // pred_check
        _
      $region38: #{tpu_custom_call.1} parent=5 // pred_check_branch
        %280 = sbr.rel (%p277) target = $region40
      $region39: #{tpu_custom_call.1} parent=5 // pred_region
        %s281 = ssub.s32 %s14, 1
        %s282 = smul.u32 16, %s24
        %p283 = scmp.lt.s32.totalorder %s23, 1
        %s284 = scalar_select %p283, %s23, 1
        %p285 = scmp.lt.s32.totalorder %s282, 15
        %s286 = scalar_select %p285, %s282, 15
        %s287 = smul.addr %s286, 2
        %s288 = smul.addr %s284, 32
        %s289 = sadd.s32 %s287, %s288
        %s290 = smul.addr %s289, 8
        %s291 = scalar_lea.vmem %s0, %s290
        %p292 = pneg %p54
        %p293 = pneg %p51
        %s294 = smul.u32 %s24, 16
        %s295 = ssub.s32 %s294, 1
        %p296 = scmp.gt.s32.totalorder %s295, 0
        %s297 = scalar_select %p296, %s295, 0
        %p298 = scmp.lt.s32.totalorder %s23, 1
        %s299 = scalar_select %p298, %s23, 1
        %p300 = scmp.lt.s32.totalorder %s297, 15
        %s301 = scalar_select %p300, %s297, 15
        %s302 = smul.addr %s301, 2
        %s303 = smul.addr %s299, 32
        %s304 = sadd.s32 %s302, %s303
        %s305 = smul.addr %s304, 8
        %s306 = scalar_lea.vmem %s1, %s305
        %p307 = pneg %p90
        %p308 = pneg %p87
        %s309 = sadd.s32 %s24, 1
        %s310 = smul.u32 %s309, 16
        %p311 = scmp.lt.s32.totalorder %s310, 15
        %s312 = scalar_select %p311, %s310, 15
        %p313 = scmp.lt.s32.totalorder %s23, 1
        %s314 = scalar_select %p313, %s23, 1
        %p315 = scmp.lt.s32.totalorder %s312, 15
        %s316 = scalar_select %p315, %s312, 15
        %s317 = smul.addr %s316, 2
        %s318 = smul.addr %s314, 32
        %s319 = sadd.s32 %s317, %s318
        %s320 = smul.addr %s319, 8
        %s321 = scalar_lea.vmem %s2, %s320
        %p322 = pneg %p126
        %p323 = pneg %p123
        %p324 = pneg %p147
        %p325 = pneg %p144
        %p326 = pneg %p168
        %p327 = pneg %p165
        %p328 = pneg %p196
        %p329 = pneg %p193
        %s330 = sand.u32 %s183, 1
        %s331 = scalar_lea.sflag [#allocation3], %s330
        %s332 = sand.u32 %s183, 1
        %s333 = smul.addr %s332, 128
        %s334 = scalar_lea.vmem [#allocation2], %s333
        %s335 = smul.u32 16, %s24
        %p336 = scmp.lt.s32.totalorder %s23, 1
        %s337 = scalar_select %p336, %s23, 1
        %p338 = scmp.lt.s32.totalorder %s335, 15
        %s339 = scalar_select %p338, %s335, 15
        %s340 = smul.addr %s339, 2
        %s341 = smul.addr %s337, 32
        %s342 = sadd.s32 %s340, %s341
        %s343 = smul.addr %s342, 8
        %s344 = scalar_lea.vmem %s0, %s343
        %s345 = smul.u32 16, %s24
        %s346 = smul.u32 %s24, 16
        %s347 = ssub.s32 %s346, 1
        %p348 = scmp.gt.s32.totalorder %s347, 0
        %s349 = scalar_select %p348, %s347, 0
        %p350 = scmp.lt.s32.totalorder %s23, 1
        %s351 = scalar_select %p350, %s23, 1
        %p352 = scmp.lt.s32.totalorder %s349, 15
        %s353 = scalar_select %p352, %s349, 15
        %s354 = smul.addr %s353, 2
        %s355 = smul.addr %s351, 32
        %s356 = sadd.s32 %s354, %s355
        %s357 = smul.addr %s356, 8
        %s358 = scalar_lea.vmem %s1, %s357
        %s359 = smul.u32 %s24, 16
        %s360 = ssub.s32 %s359, 1
        %p361 = scmp.gt.s32.totalorder %s360, 0
        %s362 = scalar_select %p361, %s360, 0
        %s363 = sadd.s32 %s24, 1
        %s364 = smul.u32 %s363, 16
        %p365 = scmp.lt.s32.totalorder %s364, 15
        %s366 = scalar_select %p365, %s364, 15
        %p367 = scmp.lt.s32.totalorder %s23, 1
        %s368 = scalar_select %p367, %s23, 1
        %p369 = scmp.lt.s32.totalorder %s366, 15
        %s370 = scalar_select %p369, %s366, 15
        %s371 = smul.addr %s370, 2
        %s372 = smul.addr %s368, 32
        %s373 = sadd.s32 %s371, %s372
        %s374 = smul.addr %s373, 8
        %s375 = scalar_lea.vmem %s2, %s374
        %s376 = sadd.s32 %s24, 1
        %s377 = smul.u32 %s376, 16
        %p378 = scmp.lt.s32.totalorder %s377, 15
        %s379 = scalar_select %p378, %s377, 15
        %s380 = smul.u32 16, %s24
        %p381 = scmp.eq.s32.totalorder %s24, 0
        %s382 = scalar_select %p381, 0.0, 1.0
        %v383 = vld [vmem:[%s344] sm:$0xff]
        %v384 = vld [vmem:[%s344 + $0x8] sm:$0xff]
        %v385 = vld [vmem:[%s344 + $0x10] sm:$0xff]
        %v386 = vld [vmem:[%s344 + $0x18] sm:$0xff]
        %v387 = vld [vmem:[%s344 + $0x20] sm:$0xff]
        %v388 = vld [vmem:[%s344 + $0x28] sm:$0xff]
        %v389 = vld [vmem:[%s344 + $0x30] sm:$0xff]
        %v390 = vld [vmem:[%s344 + $0x38] sm:$0xff]
        %v391 = vld [vmem:[%s344 + $0x40] sm:$0xff]
        %v392 = vld [vmem:[%s344 + $0x48] sm:$0xff]
        %v393 = vld [vmem:[%s344 + $0x50] sm:$0xff]
        %v394 = vld [vmem:[%s344 + $0x58] sm:$0xff]
        %v395 = vld [vmem:[%s344 + $0x60] sm:$0xff]
        %v396 = vld [vmem:[%s344 + $0x68] sm:$0xff]
        %v397 = vld [vmem:[%s344 + $0x70] sm:$0xff]
        %v398 = vld [vmem:[%s344 + $0x78] sm:$0xff]
        %v399 = vld [vmem:[%s344 + $0x80] sm:$0xff]
        %v400 = vld [vmem:[%s344 + $0x88] sm:$0xff]
        %v401 = vld [vmem:[%s344 + $0x90] sm:$0xff]
        %v402 = vld [vmem:[%s344 + $0x98] sm:$0xff]
        %v403 = vld [vmem:[%s344 + $0xa0] sm:$0xff]
        %v404 = vld [vmem:[%s344 + $0xa8] sm:$0xff]
        %v405 = vld [vmem:[%s344 + $0xb0] sm:$0xff]
        %v406 = vld [vmem:[%s344 + $0xb8] sm:$0xff]
        %v407 = vld [vmem:[%s344 + $0xc0] sm:$0xff]
        %v408 = vld [vmem:[%s344 + $0xc8] sm:$0xff]
        %v409 = vld [vmem:[%s344 + $0xd0] sm:$0xff]
        %v410 = vld [vmem:[%s344 + $0xd8] sm:$0xff]
        %v411 = vld [vmem:[%s344 + $0xe0] sm:$0xff]
        %v412 = vld [vmem:[%s344 + $0xe8] sm:$0xff]
        %v413 = vld [vmem:[%s344 + $0xf0] sm:$0xff]
        %v414 = vld [vmem:[%s344 + $0xf8] sm:$0xff]
        %v415 = vld [vmem:[%s358] sm:$0xff]
        %v416 = vld [vmem:[%s358 + $0x8] sm:$0xff]
        %v417 = vstv %s382
        %v418 = vmul.f32 %v415, %v417
        %v419 = vmul.f32 %v416, %v417
        %v420 = vld [vmem:[%s375] sm:$0xff]
        %v421 = vld [vmem:[%s375 + $0x8] sm:$0xff]
        %v422 = vmul.f32 %v420, %v417
        %v423 = vmul.f32 %v421, %v417
        %vm460 = vcmask 1040384
        %v461 = vrot.slane %v418, 7
        %v462 = vrot.slane %v419, 7
        %v463 = vsel %vm460, %v461, %v462
        %v464 = vrot.slane %v383, 7
        %v465 = vrot.slane %v384, 7
        %v466 = vsel %vm460, %v464, %v465
        %v467 = vrot.slane %v385, 7
        %v468 = vrot.slane %v386, 7
        %v469 = vsel %vm460, %v467, %v468
        %v470 = vrot.slane %v387, 7
        %v471 = vrot.slane %v388, 7
        %v472 = vsel %vm460, %v470, %v471
        %v473 = vrot.slane %v389, 7
        %v474 = vrot.slane %v390, 7
        %v475 = vsel %vm460, %v473, %v474
        %v476 = vrot.slane %v391, 7
        %v477 = vrot.slane %v392, 7
        %v478 = vsel %vm460, %v476, %v477
        %v479 = vrot.slane %v393, 7
        %v480 = vrot.slane %v394, 7
        %v481 = vsel %vm460, %v479, %v480
        %v482 = vrot.slane %v395, 7
        %v483 = vrot.slane %v396, 7
        %v484 = vsel %vm460, %v482, %v483
        %v485 = vrot.slane %v397, 7
        %v486 = vrot.slane %v398, 7
        %v487 = vsel %vm460, %v485, %v486
        %v488 = vrot.slane %v399, 7
        %v489 = vrot.slane %v400, 7
        %v490 = vsel %vm460, %v488, %v489
        %v491 = vrot.slane %v401, 7
        %v492 = vrot.slane %v402, 7
        %v493 = vsel %vm460, %v491, %v492
        %v494 = vrot.slane %v403, 7
        %v495 = vrot.slane %v404, 7
        %v496 = vsel %vm460, %v494, %v495
        %v497 = vrot.slane %v405, 7
        %v498 = vrot.slane %v406, 7
        %v499 = vsel %vm460, %v497, %v498
        %v500 = vrot.slane %v407, 7
        %v501 = vrot.slane %v408, 7
        %v502 = vsel %vm460, %v500, %v501
        %v503 = vrot.slane %v409, 7
        %v504 = vrot.slane %v410, 7
        %v505 = vsel %vm460, %v503, %v504
        %v506 = vrot.slane %v411, 7
        %v507 = vrot.slane %v412, 7
        %v508 = vsel %vm460, %v506, %v507
        %v509 = vrot.slane %v413, 7
        %v510 = vrot.slane %v414, 7
        %v511 = vsel %vm460, %v509, %v510
        %v512 = vrot.slane %v422, 7
        %v513 = vrot.slane %v423, 7
        %v514 = vsel %vm460, %v512, %v513
        %v551 = vsel %vm460, 0.0, %v461
        %v552 = vsel %vm460, 0.0, %v464
        %v553 = vsel %vm460, 0.0, %v467
        %v554 = vsel %vm460, 0.0, %v470
        %v555 = vsel %vm460, 0.0, %v473
        %v556 = vsel %vm460, 0.0, %v476
        %v557 = vsel %vm460, 0.0, %v479
        %v558 = vsel %vm460, 0.0, %v482
        %v559 = vsel %vm460, 0.0, %v485
        %v560 = vsel %vm460, 0.0, %v488
        %v561 = vsel %vm460, 0.0, %v491
        %v562 = vsel %vm460, 0.0, %v494
        %v563 = vsel %vm460, 0.0, %v497
        %v564 = vsel %vm460, 0.0, %v500
        %v565 = vsel %vm460, 0.0, %v503
        %v566 = vsel %vm460, 0.0, %v506
        %v567 = vsel %vm460, 0.0, %v509
        %v568 = vsel %vm460, 0.0, %v512
        %v569 = vsel %vm460, %v462, 0.0
        %v570 = vsel %vm460, %v465, 0.0
        %v571 = vsel %vm460, %v468, 0.0
        %v572 = vsel %vm460, %v471, 0.0
        %v573 = vsel %vm460, %v474, 0.0
        %v574 = vsel %vm460, %v477, 0.0
        %v575 = vsel %vm460, %v480, 0.0
        %v576 = vsel %vm460, %v483, 0.0
        %v577 = vsel %vm460, %v486, 0.0
        %v578 = vsel %vm460, %v489, 0.0
        %v579 = vsel %vm460, %v492, 0.0
        %v580 = vsel %vm460, %v495, 0.0
        %v581 = vsel %vm460, %v498, 0.0
        %v582 = vsel %vm460, %v501, 0.0
        %v583 = vsel %vm460, %v504, 0.0
        %v584 = vsel %vm460, %v507, 0.0
        %v585 = vsel %vm460, %v510, 0.0
        %v586 = vsel %vm460, %v513, 0.0
        %v587 = vld [vmem:[%s3] sm:$0x1]
        %v588 = vunpack.c.l.bf16 %v587
        %590 = vset.pattern.permute.xlu0 0
        %591 = vperm.xlu0 %590, %v551
        %v592 = vpop.permute.xlu0 %591
        %594 = vset.pattern.permute.xlu0 0
        %595 = vperm.xlu0 %594, %v463
        %v596 = vpop.permute.xlu0 %595
        %599 = vset.pattern.permute.xlu0 0
        %600 = vperm.xlu0 %599, %v552
        %v601 = vpop.permute.xlu0 %600
        %603 = vset.pattern.permute.xlu0 0
        %604 = vperm.xlu0 %603, %v466
        %v605 = vpop.permute.xlu0 %604
        %608 = vset.pattern.permute.xlu0 0
        %609 = vperm.xlu0 %608, %v553
        %v610 = vpop.permute.xlu0 %609
        %612 = vset.pattern.permute.xlu0 0
        %613 = vperm.xlu0 %612, %v469
        %v614 = vpop.permute.xlu0 %613
        %617 = vset.pattern.permute.xlu0 0
        %618 = vperm.xlu0 %617, %v554
        %v619 = vpop.permute.xlu0 %618
        %621 = vset.pattern.permute.xlu0 0
        %622 = vperm.xlu0 %621, %v472
        %v623 = vpop.permute.xlu0 %622
        %626 = vset.pattern.permute.xlu0 0
        %627 = vperm.xlu0 %626, %v555
        %v628 = vpop.permute.xlu0 %627
        %630 = vset.pattern.permute.xlu0 0
        %631 = vperm.xlu0 %630, %v475
        %v632 = vpop.permute.xlu0 %631
        %635 = vset.pattern.permute.xlu0 0
        %636 = vperm.xlu0 %635, %v556
        %v637 = vpop.permute.xlu0 %636
        %639 = vset.pattern.permute.xlu0 0
        %640 = vperm.xlu0 %639, %v478
        %v641 = vpop.permute.xlu0 %640
        %644 = vset.pattern.permute.xlu0 0
        %645 = vperm.xlu0 %644, %v557
        %v646 = vpop.permute.xlu0 %645
        %648 = vset.pattern.permute.xlu0 0
        %649 = vperm.xlu0 %648, %v481
        %v650 = vpop.permute.xlu0 %649
        %653 = vset.pattern.permute.xlu0 0
        %654 = vperm.xlu0 %653, %v558
        %v655 = vpop.permute.xlu0 %654
        %657 = vset.pattern.permute.xlu0 0
        %658 = vperm.xlu0 %657, %v484
        %v659 = vpop.permute.xlu0 %658
        %662 = vset.pattern.permute.xlu0 0
        %663 = vperm.xlu0 %662, %v559
        %v664 = vpop.permute.xlu0 %663
        %666 = vset.pattern.permute.xlu0 0
        %667 = vperm.xlu0 %666, %v487
        %v668 = vpop.permute.xlu0 %667
        %671 = vset.pattern.permute.xlu0 0
        %672 = vperm.xlu0 %671, %v560
        %v673 = vpop.permute.xlu0 %672
        %675 = vset.pattern.permute.xlu0 0
        %676 = vperm.xlu0 %675, %v490
        %v677 = vpop.permute.xlu0 %676
        %680 = vset.pattern.permute.xlu0 0
        %681 = vperm.xlu0 %680, %v561
        %v682 = vpop.permute.xlu0 %681
        %684 = vset.pattern.permute.xlu0 0
        %685 = vperm.xlu0 %684, %v493
        %v686 = vpop.permute.xlu0 %685
        %689 = vset.pattern.permute.xlu0 0
        %690 = vperm.xlu0 %689, %v562
        %v691 = vpop.permute.xlu0 %690
        %693 = vset.pattern.permute.xlu0 0
        %694 = vperm.xlu0 %693, %v496
        %v695 = vpop.permute.xlu0 %694
        %698 = vset.pattern.permute.xlu0 0
        %699 = vperm.xlu0 %698, %v563
        %v700 = vpop.permute.xlu0 %699
        %702 = vset.pattern.permute.xlu0 0
        %703 = vperm.xlu0 %702, %v499
        %v704 = vpop.permute.xlu0 %703
        %707 = vset.pattern.permute.xlu0 0
        %708 = vperm.xlu0 %707, %v564
        %v709 = vpop.permute.xlu0 %708
        %711 = vset.pattern.permute.xlu0 0
        %712 = vperm.xlu0 %711, %v502
        %v713 = vpop.permute.xlu0 %712
        %716 = vset.pattern.permute.xlu0 0
        %717 = vperm.xlu0 %716, %v565
        %v718 = vpop.permute.xlu0 %717
        %720 = vset.pattern.permute.xlu0 0
        %721 = vperm.xlu0 %720, %v505
        %v722 = vpop.permute.xlu0 %721
        %725 = vset.pattern.permute.xlu0 0
        %726 = vperm.xlu0 %725, %v566
        %v727 = vpop.permute.xlu0 %726
        %729 = vset.pattern.permute.xlu0 0
        %730 = vperm.xlu0 %729, %v508
        %v731 = vpop.permute.xlu0 %730
        %v733 = vperm.slane %v588, 0
        %v734 = vmul.f32 %v592, %v733
        %v735 = vmul.f32 %v596, %v733
        %v736 = vmul.f32 %v601, %v733
        %v737 = vmul.f32 %v605, %v733
        %v738 = vmul.f32 %v610, %v733
        %v739 = vmul.f32 %v614, %v733
        %v740 = vmul.f32 %v619, %v733
        %v741 = vmul.f32 %v623, %v733
        %v742 = vmul.f32 %v628, %v733
        %v743 = vmul.f32 %v632, %v733
        %v744 = vmul.f32 %v637, %v733
        %v745 = vmul.f32 %v641, %v733
        %v746 = vmul.f32 %v646, %v733
        %v747 = vmul.f32 %v650, %v733
        %v748 = vmul.f32 %v655, %v733
        %v749 = vmul.f32 %v659, %v733
        %v750 = vmul.f32 %v664, %v733
        %v751 = vmul.f32 %v668, %v733
        %v752 = vmul.f32 %v673, %v733
        %v753 = vmul.f32 %v677, %v733
        %v754 = vmul.f32 %v682, %v733
        %v755 = vmul.f32 %v686, %v733
        %v756 = vmul.f32 %v691, %v733
        %v757 = vmul.f32 %v695, %v733
        %v758 = vmul.f32 %v700, %v733
        %v759 = vmul.f32 %v704, %v733
        %v760 = vmul.f32 %v709, %v733
        %v761 = vmul.f32 %v713, %v733
        %v762 = vmul.f32 %v718, %v733
        %v763 = vmul.f32 %v722, %v733
        %v764 = vmul.f32 %v727, %v733
        %v765 = vmul.f32 %v731, %v733
        %v766 = vadd.f32 %v734, 0.0
        %v767 = vadd.f32 %v735, 0.0
        %v768 = vadd.f32 %v736, 0.0
        %v769 = vadd.f32 %v737, 0.0
        %v770 = vadd.f32 %v738, 0.0
        %v771 = vadd.f32 %v739, 0.0
        %v772 = vadd.f32 %v740, 0.0
        %v773 = vadd.f32 %v741, 0.0
        %v774 = vadd.f32 %v742, 0.0
        %v775 = vadd.f32 %v743, 0.0
        %v776 = vadd.f32 %v744, 0.0
        %v777 = vadd.f32 %v745, 0.0
        %v778 = vadd.f32 %v746, 0.0
        %v779 = vadd.f32 %v747, 0.0
        %v780 = vadd.f32 %v748, 0.0
        %v781 = vadd.f32 %v749, 0.0
        %v782 = vadd.f32 %v750, 0.0
        %v783 = vadd.f32 %v751, 0.0
        %v784 = vadd.f32 %v752, 0.0
        %v785 = vadd.f32 %v753, 0.0
        %v786 = vadd.f32 %v754, 0.0
        %v787 = vadd.f32 %v755, 0.0
        %v788 = vadd.f32 %v756, 0.0
        %v789 = vadd.f32 %v757, 0.0
        %v790 = vadd.f32 %v758, 0.0
        %v791 = vadd.f32 %v759, 0.0
        %v792 = vadd.f32 %v760, 0.0
        %v793 = vadd.f32 %v761, 0.0
        %v794 = vadd.f32 %v762, 0.0
        %v795 = vadd.f32 %v763, 0.0
        %v796 = vadd.f32 %v764, 0.0
        %v797 = vadd.f32 %v765, 0.0
        %799 = vset.pattern.permute.xlu0 0
        %800 = vperm.xlu0 %799, %v569
        %v801 = vpop.permute.xlu0 %800
        %804 = vset.pattern.permute.xlu0 0
        %805 = vperm.xlu0 %804, %v570
        %v806 = vpop.permute.xlu0 %805
        %809 = vset.pattern.permute.xlu0 0
        %810 = vperm.xlu0 %809, %v571
        %v811 = vpop.permute.xlu0 %810
        %814 = vset.pattern.permute.xlu0 0
        %815 = vperm.xlu0 %814, %v572
        %v816 = vpop.permute.xlu0 %815
        %819 = vset.pattern.permute.xlu0 0
        %820 = vperm.xlu0 %819, %v573
        %v821 = vpop.permute.xlu0 %820
        %824 = vset.pattern.permute.xlu0 0
        %825 = vperm.xlu0 %824, %v574
        %v826 = vpop.permute.xlu0 %825
        %829 = vset.pattern.permute.xlu0 0
        %830 = vperm.xlu0 %829, %v575
        %v831 = vpop.permute.xlu0 %830
        %834 = vset.pattern.permute.xlu0 0
        %835 = vperm.xlu0 %834, %v576
        %v836 = vpop.permute.xlu0 %835
        %839 = vset.pattern.permute.xlu0 0
        %840 = vperm.xlu0 %839, %v577
        %v841 = vpop.permute.xlu0 %840
        %844 = vset.pattern.permute.xlu0 0
        %845 = vperm.xlu0 %844, %v578
        %v846 = vpop.permute.xlu0 %845
        %849 = vset.pattern.permute.xlu0 0
        %850 = vperm.xlu0 %849, %v579
        %v851 = vpop.permute.xlu0 %850
        %854 = vset.pattern.permute.xlu0 0
        %855 = vperm.xlu0 %854, %v580
        %v856 = vpop.permute.xlu0 %855
        %859 = vset.pattern.permute.xlu0 0
        %860 = vperm.xlu0 %859, %v581
        %v861 = vpop.permute.xlu0 %860
        %864 = vset.pattern.permute.xlu0 0
        %865 = vperm.xlu0 %864, %v582
        %v866 = vpop.permute.xlu0 %865
        %869 = vset.pattern.permute.xlu0 0
        %870 = vperm.xlu0 %869, %v583
        %v871 = vpop.permute.xlu0 %870
        %874 = vset.pattern.permute.xlu0 0
        %875 = vperm.xlu0 %874, %v584
        %v876 = vpop.permute.xlu0 %875
        %v878 = vperm.slane %v588, 1
        %v879 = vmul.f32 %v592, %v878
        %v880 = vmul.f32 %v596, %v878
        %v881 = vmul.f32 %v801, %v878
        %v882 = vmul.f32 %v601, %v878
        %v883 = vmul.f32 %v605, %v878
        %v884 = vmul.f32 %v806, %v878
        %v885 = vmul.f32 %v610, %v878
        %v886 = vmul.f32 %v614, %v878
        %v887 = vmul.f32 %v811, %v878
        %v888 = vmul.f32 %v619, %v878
        %v889 = vmul.f32 %v623, %v878
        %v890 = vmul.f32 %v816, %v878
        %v891 = vmul.f32 %v628, %v878
        %v892 = vmul.f32 %v632, %v878
        %v893 = vmul.f32 %v821, %v878
        %v894 = vmul.f32 %v637, %v878
        %v895 = vmul.f32 %v641, %v878
        %v896 = vmul.f32 %v826, %v878
        %v897 = vmul.f32 %v646, %v878
        %v898 = vmul.f32 %v650, %v878
        %v899 = vmul.f32 %v831, %v878
        %v900 = vmul.f32 %v655, %v878
        %v901 = vmul.f32 %v659, %v878
        %v902 = vmul.f32 %v836, %v878
        %v903 = vmul.f32 %v664, %v878
        %v904 = vmul.f32 %v668, %v878
        %v905 = vmul.f32 %v841, %v878
        %v906 = vmul.f32 %v673, %v878
        %v907 = vmul.f32 %v677, %v878
        %v908 = vmul.f32 %v846, %v878
        %v909 = vmul.f32 %v682, %v878
        %v910 = vmul.f32 %v686, %v878
        %v911 = vmul.f32 %v851, %v878
        %v912 = vmul.f32 %v691, %v878
        %v913 = vmul.f32 %v695, %v878
        %v914 = vmul.f32 %v856, %v878
        %v915 = vmul.f32 %v700, %v878
        %v916 = vmul.f32 %v704, %v878
        %v917 = vmul.f32 %v861, %v878
        %v918 = vmul.f32 %v709, %v878
        %v919 = vmul.f32 %v713, %v878
        %v920 = vmul.f32 %v866, %v878
        %v921 = vmul.f32 %v718, %v878
        %v922 = vmul.f32 %v722, %v878
        %v923 = vmul.f32 %v871, %v878
        %v924 = vmul.f32 %v727, %v878
        %v925 = vmul.f32 %v731, %v878
        %v926 = vmul.f32 %v876, %v878
        %vm975 = vcmask 1046528
        %v976 = vrot.slane %v879, 1
        %v977 = vrot.slane %v880, 1
        %v978 = vsel %vm975, %v976, %v977
        %v979 = vrot.slane %v881, 1
        %v980 = vsel %vm975, %v977, %v979
        %v981 = vrot.slane %v882, 1
        %v982 = vrot.slane %v883, 1
        %v983 = vsel %vm975, %v981, %v982
        %v984 = vrot.slane %v884, 1
        %v985 = vsel %vm975, %v982, %v984
        %v986 = vrot.slane %v885, 1
        %v987 = vrot.slane %v886, 1
        %v988 = vsel %vm975, %v986, %v987
        %v989 = vrot.slane %v887, 1
        %v990 = vsel %vm975, %v987, %v989
        %v991 = vrot.slane %v888, 1
        %v992 = vrot.slane %v889, 1
        %v993 = vsel %vm975, %v991, %v992
        %v994 = vrot.slane %v890, 1
        %v995 = vsel %vm975, %v992, %v994
        %v996 = vrot.slane %v891, 1
        %v997 = vrot.slane %v892, 1
        %v998 = vsel %vm975, %v996, %v997
        %v999 = vrot.slane %v893, 1
        %v1000 = vsel %vm975, %v997, %v999
        %v1001 = vrot.slane %v894, 1
        %v1002 = vrot.slane %v895, 1
        %v1003 = vsel %vm975, %v1001, %v1002
        %v1004 = vrot.slane %v896, 1
        %v1005 = vsel %vm975, %v1002, %v1004
        %v1006 = vrot.slane %v897, 1
        %v1007 = vrot.slane %v898, 1
        %v1008 = vsel %vm975, %v1006, %v1007
        %v1009 = vrot.slane %v899, 1
        %v1010 = vsel %vm975, %v1007, %v1009
        %v1011 = vrot.slane %v900, 1
        %v1012 = vrot.slane %v901, 1
        %v1013 = vsel %vm975, %v1011, %v1012
        %v1014 = vrot.slane %v902, 1
        %v1015 = vsel %vm975, %v1012, %v1014
        %v1016 = vrot.slane %v903, 1
        %v1017 = vrot.slane %v904, 1
        %v1018 = vsel %vm975, %v1016, %v1017
        %v1019 = vrot.slane %v905, 1
        %v1020 = vsel %vm975, %v1017, %v1019
        %v1021 = vrot.slane %v906, 1
        %v1022 = vrot.slane %v907, 1
        %v1023 = vsel %vm975, %v1021, %v1022
        %v1024 = vrot.slane %v908, 1
        %v1025 = vsel %vm975, %v1022, %v1024
        %v1026 = vrot.slane %v909, 1
        %v1027 = vrot.slane %v910, 1
        %v1028 = vsel %vm975, %v1026, %v1027
        %v1029 = vrot.slane %v911, 1
        %v1030 = vsel %vm975, %v1027, %v1029
        %v1031 = vrot.slane %v912, 1
        %v1032 = vrot.slane %v913, 1
        %v1033 = vsel %vm975, %v1031, %v1032
        %v1034 = vrot.slane %v914, 1
        %v1035 = vsel %vm975, %v1032, %v1034
        %v1036 = vrot.slane %v915, 1
        %v1037 = vrot.slane %v916, 1
        %v1038 = vsel %vm975, %v1036, %v1037
        %v1039 = vrot.slane %v917, 1
        %v1040 = vsel %vm975, %v1037, %v1039
        %v1041 = vrot.slane %v918, 1
        %v1042 = vrot.slane %v919, 1
        %v1043 = vsel %vm975, %v1041, %v1042
        %v1044 = vrot.slane %v920, 1
        %v1045 = vsel %vm975, %v1042, %v1044
        %v1046 = vrot.slane %v921, 1
        %v1047 = vrot.slane %v922, 1
        %v1048 = vsel %vm975, %v1046, %v1047
        %v1049 = vrot.slane %v923, 1
        %v1050 = vsel %vm975, %v1047, %v1049
        %v1051 = vrot.slane %v924, 1
        %v1052 = vrot.slane %v925, 1
        %v1053 = vsel %vm975, %v1051, %v1052
        %v1054 = vrot.slane %v926, 1
        %v1055 = vsel %vm975, %v1052, %v1054
        %v1088 = vadd.f32 %v766, %v978
        %v1089 = vadd.f32 %v767, %v980
        %v1090 = vadd.f32 %v768, %v983
        %v1091 = vadd.f32 %v769, %v985
        %v1092 = vadd.f32 %v770, %v988
        %v1093 = vadd.f32 %v771, %v990
        %v1094 = vadd.f32 %v772, %v993
        %v1095 = vadd.f32 %v773, %v995
        %v1096 = vadd.f32 %v774, %v998
        %v1097 = vadd.f32 %v775, %v1000
        %v1098 = vadd.f32 %v776, %v1003
        %v1099 = vadd.f32 %v777, %v1005
        %v1100 = vadd.f32 %v778, %v1008
        %v1101 = vadd.f32 %v779, %v1010
        %v1102 = vadd.f32 %v780, %v1013
        %v1103 = vadd.f32 %v781, %v1015
        %v1104 = vadd.f32 %v782, %v1018
        %v1105 = vadd.f32 %v783, %v1020
        %v1106 = vadd.f32 %v784, %v1023
        %v1107 = vadd.f32 %v785, %v1025
        %v1108 = vadd.f32 %v786, %v1028
        %v1109 = vadd.f32 %v787, %v1030
        %v1110 = vadd.f32 %v788, %v1033
        %v1111 = vadd.f32 %v789, %v1035
        %v1112 = vadd.f32 %v790, %v1038
        %v1113 = vadd.f32 %v791, %v1040
        %v1114 = vadd.f32 %v792, %v1043
        %v1115 = vadd.f32 %v793, %v1045
        %v1116 = vadd.f32 %v794, %v1048
        %v1117 = vadd.f32 %v795, %v1050
        %v1118 = vadd.f32 %v796, %v1053
        %v1119 = vadd.f32 %v797, %v1055
        %v1120 = vld [vmem:[%s3] sm:$0x2]
        %v1121 = vunpack.c.l.bf16 %v1120
        %v1122 = vperm.slane %v1121, 2
        %v1123 = vmul.f32 %v592, %v1122
        %v1124 = vmul.f32 %v596, %v1122
        %v1125 = vmul.f32 %v801, %v1122
        %v1126 = vmul.f32 %v601, %v1122
        %v1127 = vmul.f32 %v605, %v1122
        %v1128 = vmul.f32 %v806, %v1122
        %v1129 = vmul.f32 %v610, %v1122
        %v1130 = vmul.f32 %v614, %v1122
        %v1131 = vmul.f32 %v811, %v1122
        %v1132 = vmul.f32 %v619, %v1122
        %v1133 = vmul.f32 %v623, %v1122
        %v1134 = vmul.f32 %v816, %v1122
        %v1135 = vmul.f32 %v628, %v1122
        %v1136 = vmul.f32 %v632, %v1122
        %v1137 = vmul.f32 %v821, %v1122
        %v1138 = vmul.f32 %v637, %v1122
        %v1139 = vmul.f32 %v641, %v1122
        %v1140 = vmul.f32 %v826, %v1122
        %v1141 = vmul.f32 %v646, %v1122
        %v1142 = vmul.f32 %v650, %v1122
        %v1143 = vmul.f32 %v831, %v1122
        %v1144 = vmul.f32 %v655, %v1122
        %v1145 = vmul.f32 %v659, %v1122
        %v1146 = vmul.f32 %v836, %v1122
        %v1147 = vmul.f32 %v664, %v1122
        %v1148 = vmul.f32 %v668, %v1122
        %v1149 = vmul.f32 %v841, %v1122
        %v1150 = vmul.f32 %v673, %v1122
        %v1151 = vmul.f32 %v677, %v1122
        %v1152 = vmul.f32 %v846, %v1122
        %v1153 = vmul.f32 %v682, %v1122
        %v1154 = vmul.f32 %v686, %v1122
        %v1155 = vmul.f32 %v851, %v1122
        %v1156 = vmul.f32 %v691, %v1122
        %v1157 = vmul.f32 %v695, %v1122
        %v1158 = vmul.f32 %v856, %v1122
        %v1159 = vmul.f32 %v700, %v1122
        %v1160 = vmul.f32 %v704, %v1122
        %v1161 = vmul.f32 %v861, %v1122
        %v1162 = vmul.f32 %v709, %v1122
        %v1163 = vmul.f32 %v713, %v1122
        %v1164 = vmul.f32 %v866, %v1122
        %v1165 = vmul.f32 %v718, %v1122
        %v1166 = vmul.f32 %v722, %v1122
        %v1167 = vmul.f32 %v871, %v1122
        %v1168 = vmul.f32 %v727, %v1122
        %v1169 = vmul.f32 %v731, %v1122
        %v1170 = vmul.f32 %v876, %v1122
        %vm1219 = vcmask 1045504
        %v1220 = vrot.slane %v1123, 2
        %v1221 = vrot.slane %v1124, 2
        %v1222 = vsel %vm1219, %v1220, %v1221
        %v1223 = vrot.slane %v1125, 2
        %v1224 = vsel %vm1219, %v1221, %v1223
        %v1225 = vrot.slane %v1126, 2
        %v1226 = vrot.slane %v1127, 2
        %v1227 = vsel %vm1219, %v1225, %v1226
        %v1228 = vrot.slane %v1128, 2
        %v1229 = vsel %vm1219, %v1226, %v1228
        %v1230 = vrot.slane %v1129, 2
        %v1231 = vrot.slane %v1130, 2
        %v1232 = vsel %vm1219, %v1230, %v1231
        %v1233 = vrot.slane %v1131, 2
        %v1234 = vsel %vm1219, %v1231, %v1233
        %v1235 = vrot.slane %v1132, 2
        %v1236 = vrot.slane %v1133, 2
        %v1237 = vsel %vm1219, %v1235, %v1236
        %v1238 = vrot.slane %v1134, 2
        %v1239 = vsel %vm1219, %v1236, %v1238
        %v1240 = vrot.slane %v1135, 2
        %v1241 = vrot.slane %v1136, 2
        %v1242 = vsel %vm1219, %v1240, %v1241
        %v1243 = vrot.slane %v1137, 2
        %v1244 = vsel %vm1219, %v1241, %v1243
        %v1245 = vrot.slane %v1138, 2
        %v1246 = vrot.slane %v1139, 2
        %v1247 = vsel %vm1219, %v1245, %v1246
        %v1248 = vrot.slane %v1140, 2
        %v1249 = vsel %vm1219, %v1246, %v1248
        %v1250 = vrot.slane %v1141, 2
        %v1251 = vrot.slane %v1142, 2
        %v1252 = vsel %vm1219, %v1250, %v1251
        %v1253 = vrot.slane %v1143, 2
        %v1254 = vsel %vm1219, %v1251, %v1253
        %v1255 = vrot.slane %v1144, 2
        %v1256 = vrot.slane %v1145, 2
        %v1257 = vsel %vm1219, %v1255, %v1256
        %v1258 = vrot.slane %v1146, 2
        %v1259 = vsel %vm1219, %v1256, %v1258
        %v1260 = vrot.slane %v1147, 2
        %v1261 = vrot.slane %v1148, 2
        %v1262 = vsel %vm1219, %v1260, %v1261
        %v1263 = vrot.slane %v1149, 2
        %v1264 = vsel %vm1219, %v1261, %v1263
        %v1265 = vrot.slane %v1150, 2
        %v1266 = vrot.slane %v1151, 2
        %v1267 = vsel %vm1219, %v1265, %v1266
        %v1268 = vrot.slane %v1152, 2
        %v1269 = vsel %vm1219, %v1266, %v1268
        %v1270 = vrot.slane %v1153, 2
        %v1271 = vrot.slane %v1154, 2
        %v1272 = vsel %vm1219, %v1270, %v1271
        %v1273 = vrot.slane %v1155, 2
        %v1274 = vsel %vm1219, %v1271, %v1273
        %v1275 = vrot.slane %v1156, 2
        %v1276 = vrot.slane %v1157, 2
        %v1277 = vsel %vm1219, %v1275, %v1276
        %v1278 = vrot.slane %v1158, 2
        %v1279 = vsel %vm1219, %v1276, %v1278
        %v1280 = vrot.slane %v1159, 2
        %v1281 = vrot.slane %v1160, 2
        %v1282 = vsel %vm1219, %v1280, %v1281
        %v1283 = vrot.slane %v1161, 2
        %v1284 = vsel %vm1219, %v1281, %v1283
        %v1285 = vrot.slane %v1162, 2
        %v1286 = vrot.slane %v1163, 2
        %v1287 = vsel %vm1219, %v1285, %v1286
        %v1288 = vrot.slane %v1164, 2
        %v1289 = vsel %vm1219, %v1286, %v1288
        %v1290 = vrot.slane %v1165, 2
        %v1291 = vrot.slane %v1166, 2
        %v1292 = vsel %vm1219, %v1290, %v1291
        %v1293 = vrot.slane %v1167, 2
        %v1294 = vsel %vm1219, %v1291, %v1293
        %v1295 = vrot.slane %v1168, 2
        %v1296 = vrot.slane %v1169, 2
        %v1297 = vsel %vm1219, %v1295, %v1296
        %v1298 = vrot.slane %v1170, 2
        %v1299 = vsel %vm1219, %v1296, %v1298
        %v1332 = vadd.f32 %v1088, %v1222
        %v1333 = vadd.f32 %v1089, %v1224
        %v1334 = vadd.f32 %v1090, %v1227
        %v1335 = vadd.f32 %v1091, %v1229
        %v1336 = vadd.f32 %v1092, %v1232
        %v1337 = vadd.f32 %v1093, %v1234
        %v1338 = vadd.f32 %v1094, %v1237
        %v1339 = vadd.f32 %v1095, %v1239
        %v1340 = vadd.f32 %v1096, %v1242
        %v1341 = vadd.f32 %v1097, %v1244
        %v1342 = vadd.f32 %v1098, %v1247
        %v1343 = vadd.f32 %v1099, %v1249
        %v1344 = vadd.f32 %v1100, %v1252
        %v1345 = vadd.f32 %v1101, %v1254
        %v1346 = vadd.f32 %v1102, %v1257
        %v1347 = vadd.f32 %v1103, %v1259
        %v1348 = vadd.f32 %v1104, %v1262
        %v1349 = vadd.f32 %v1105, %v1264
        %v1350 = vadd.f32 %v1106, %v1267
        %v1351 = vadd.f32 %v1107, %v1269
        %v1352 = vadd.f32 %v1108, %v1272
        %v1353 = vadd.f32 %v1109, %v1274
        %v1354 = vadd.f32 %v1110, %v1277
        %v1355 = vadd.f32 %v1111, %v1279
        %v1356 = vadd.f32 %v1112, %v1282
        %v1357 = vadd.f32 %v1113, %v1284
        %v1358 = vadd.f32 %v1114, %v1287
        %v1359 = vadd.f32 %v1115, %v1289
        %v1360 = vadd.f32 %v1116, %v1292
        %v1361 = vadd.f32 %v1117, %v1294
        %v1362 = vadd.f32 %v1118, %v1297
        %v1363 = vadd.f32 %v1119, %v1299
        %s1364 = scalar_lea.vmem %s3, 2
        %v1365 = vld [vmem:[%s1364] sm:$0x1]
        %v1366 = vunpack.c.l.bf16 %v1365
        %1368 = vset.pattern.permute.xlu0 0
        %1369 = vperm.xlu0 %1368, %v567
        %v1370 = vpop.permute.xlu0 %1369
        %1372 = vset.pattern.permute.xlu0 0
        %1373 = vperm.xlu0 %1372, %v511
        %v1374 = vpop.permute.xlu0 %1373
        %v1376 = vperm.slane %v1366, 0
        %v1377 = vmul.f32 %v601, %v1376
        %v1378 = vmul.f32 %v605, %v1376
        %v1379 = vmul.f32 %v610, %v1376
        %v1380 = vmul.f32 %v614, %v1376
        %v1381 = vmul.f32 %v619, %v1376
        %v1382 = vmul.f32 %v623, %v1376
        %v1383 = vmul.f32 %v628, %v1376
        %v1384 = vmul.f32 %v632, %v1376
        %v1385 = vmul.f32 %v637, %v1376
        %v1386 = vmul.f32 %v641, %v1376
        %v1387 = vmul.f32 %v646, %v1376
        %v1388 = vmul.f32 %v650, %v1376
        %v1389 = vmul.f32 %v655, %v1376
        %v1390 = vmul.f32 %v659, %v1376
        %v1391 = vmul.f32 %v664, %v1376
        %v1392 = vmul.f32 %v668, %v1376
        %v1393 = vmul.f32 %v673, %v1376
        %v1394 = vmul.f32 %v677, %v1376
        %v1395 = vmul.f32 %v682, %v1376
        %v1396 = vmul.f32 %v686, %v1376
        %v1397 = vmul.f32 %v691, %v1376
        %v1398 = vmul.f32 %v695, %v1376
        %v1399 = vmul.f32 %v700, %v1376
        %v1400 = vmul.f32 %v704, %v1376
        %v1401 = vmul.f32 %v709, %v1376
        %v1402 = vmul.f32 %v713, %v1376
        %v1403 = vmul.f32 %v718, %v1376
        %v1404 = vmul.f32 %v722, %v1376
        %v1405 = vmul.f32 %v727, %v1376
        %v1406 = vmul.f32 %v731, %v1376
        %v1407 = vmul.f32 %v1370, %v1376
        %v1408 = vmul.f32 %v1374, %v1376
        %v1409 = vadd.f32 %v1332, %v1377
        %v1410 = vadd.f32 %v1333, %v1378
        %v1411 = vadd.f32 %v1334, %v1379
        %v1412 = vadd.f32 %v1335, %v1380
        %v1413 = vadd.f32 %v1336, %v1381
        %v1414 = vadd.f32 %v1337, %v1382
        %v1415 = vadd.f32 %v1338, %v1383
        %v1416 = vadd.f32 %v1339, %v1384
        %v1417 = vadd.f32 %v1340, %v1385
        %v1418 = vadd.f32 %v1341, %v1386
        %v1419 = vadd.f32 %v1342, %v1387
        %v1420 = vadd.f32 %v1343, %v1388
        %v1421 = vadd.f32 %v1344, %v1389
        %v1422 = vadd.f32 %v1345, %v1390
        %v1423 = vadd.f32 %v1346, %v1391
        %v1424 = vadd.f32 %v1347, %v1392
        %v1425 = vadd.f32 %v1348, %v1393
        %v1426 = vadd.f32 %v1349, %v1394
        %v1427 = vadd.f32 %v1350, %v1395
        %v1428 = vadd.f32 %v1351, %v1396
        %v1429 = vadd.f32 %v1352, %v1397
        %v1430 = vadd.f32 %v1353, %v1398
        %v1431 = vadd.f32 %v1354, %v1399
        %v1432 = vadd.f32 %v1355, %v1400
        %v1433 = vadd.f32 %v1356, %v1401
        %v1434 = vadd.f32 %v1357, %v1402
        %v1435 = vadd.f32 %v1358, %v1403
        %v1436 = vadd.f32 %v1359, %v1404
        %v1437 = vadd.f32 %v1360, %v1405
        %v1438 = vadd.f32 %v1361, %v1406
        %v1439 = vadd.f32 %v1362, %v1407
        %v1440 = vadd.f32 %v1363, %v1408
        %1442 = vset.pattern.permute.xlu0 0
        %1443 = vperm.xlu0 %1442, %v585
        %v1444 = vpop.permute.xlu0 %1443
        %v1446 = vperm.slane %v1366, 1
        %v1447 = vmul.f32 %v601, %v1446
        %v1448 = vmul.f32 %v605, %v1446
        %v1449 = vmul.f32 %v806, %v1446
        %v1450 = vmul.f32 %v610, %v1446
        %v1451 = vmul.f32 %v614, %v1446
        %v1452 = vmul.f32 %v811, %v1446
        %v1453 = vmul.f32 %v619, %v1446
        %v1454 = vmul.f32 %v623, %v1446
        %v1455 = vmul.f32 %v816, %v1446
        %v1456 = vmul.f32 %v628, %v1446
        %v1457 = vmul.f32 %v632, %v1446
        %v1458 = vmul.f32 %v821, %v1446
        %v1459 = vmul.f32 %v637, %v1446
        %v1460 = vmul.f32 %v641, %v1446
        %v1461 = vmul.f32 %v826, %v1446
        %v1462 = vmul.f32 %v646, %v1446
        %v1463 = vmul.f32 %v650, %v1446
        %v1464 = vmul.f32 %v831, %v1446
        %v1465 = vmul.f32 %v655, %v1446
        %v1466 = vmul.f32 %v659, %v1446
        %v1467 = vmul.f32 %v836, %v1446
        %v1468 = vmul.f32 %v664, %v1446
        %v1469 = vmul.f32 %v668, %v1446
        %v1470 = vmul.f32 %v841, %v1446
        %v1471 = vmul.f32 %v673, %v1446
        %v1472 = vmul.f32 %v677, %v1446
        %v1473 = vmul.f32 %v846, %v1446
        %v1474 = vmul.f32 %v682, %v1446
        %v1475 = vmul.f32 %v686, %v1446
        %v1476 = vmul.f32 %v851, %v1446
        %v1477 = vmul.f32 %v691, %v1446
        %v1478 = vmul.f32 %v695, %v1446
        %v1479 = vmul.f32 %v856, %v1446
        %v1480 = vmul.f32 %v700, %v1446
        %v1481 = vmul.f32 %v704, %v1446
        %v1482 = vmul.f32 %v861, %v1446
        %v1483 = vmul.f32 %v709, %v1446
        %v1484 = vmul.f32 %v713, %v1446
        %v1485 = vmul.f32 %v866, %v1446
        %v1486 = vmul.f32 %v718, %v1446
        %v1487 = vmul.f32 %v722, %v1446
        %v1488 = vmul.f32 %v871, %v1446
        %v1489 = vmul.f32 %v727, %v1446
        %v1490 = vmul.f32 %v731, %v1446
        %v1491 = vmul.f32 %v876, %v1446
        %v1492 = vmul.f32 %v1370, %v1446
        %v1493 = vmul.f32 %v1374, %v1446
        %v1494 = vmul.f32 %v1444, %v1446
        %v1543 = vrot.slane %v1447, 1
        %v1544 = vrot.slane %v1448, 1
        %v1545 = vsel %vm975, %v1543, %v1544
        %v1546 = vrot.slane %v1449, 1
        %v1547 = vsel %vm975, %v1544, %v1546
        %v1548 = vrot.slane %v1450, 1
        %v1549 = vrot.slane %v1451, 1
        %v1550 = vsel %vm975, %v1548, %v1549
        %v1551 = vrot.slane %v1452, 1
        %v1552 = vsel %vm975, %v1549, %v1551
        %v1553 = vrot.slane %v1453, 1
        %v1554 = vrot.slane %v1454, 1
        %v1555 = vsel %vm975, %v1553, %v1554
        %v1556 = vrot.slane %v1455, 1
        %v1557 = vsel %vm975, %v1554, %v1556
        %v1558 = vrot.slane %v1456, 1
        %v1559 = vrot.slane %v1457, 1
        %v1560 = vsel %vm975, %v1558, %v1559
        %v1561 = vrot.slane %v1458, 1
        %v1562 = vsel %vm975, %v1559, %v1561
        %v1563 = vrot.slane %v1459, 1
        %v1564 = vrot.slane %v1460, 1
        %v1565 = vsel %vm975, %v1563, %v1564
        %v1566 = vrot.slane %v1461, 1
        %v1567 = vsel %vm975, %v1564, %v1566
        %v1568 = vrot.slane %v1462, 1
        %v1569 = vrot.slane %v1463, 1
        %v1570 = vsel %vm975, %v1568, %v1569
        %v1571 = vrot.slane %v1464, 1
        %v1572 = vsel %vm975, %v1569, %v1571
        %v1573 = vrot.slane %v1465, 1
        %v1574 = vrot.slane %v1466, 1
        %v1575 = vsel %vm975, %v1573, %v1574
        %v1576 = vrot.slane %v1467, 1
        %v1577 = vsel %vm975, %v1574, %v1576
        %v1578 = vrot.slane %v1468, 1
        %v1579 = vrot.slane %v1469, 1
        %v1580 = vsel %vm975, %v1578, %v1579
        %v1581 = vrot.slane %v1470, 1
        %v1582 = vsel %vm975, %v1579, %v1581
        %v1583 = vrot.slane %v1471, 1
        %v1584 = vrot.slane %v1472, 1
        %v1585 = vsel %vm975, %v1583, %v1584
        %v1586 = vrot.slane %v1473, 1
        %v1587 = vsel %vm975, %v1584, %v1586
        %v1588 = vrot.slane %v1474, 1
        %v1589 = vrot.slane %v1475, 1
        %v1590 = vsel %vm975, %v1588, %v1589
        %v1591 = vrot.slane %v1476, 1
        %v1592 = vsel %vm975, %v1589, %v1591
        %v1593 = vrot.slane %v1477, 1
        %v1594 = vrot.slane %v1478, 1
        %v1595 = vsel %vm975, %v1593, %v1594
        %v1596 = vrot.slane %v1479, 1
        %v1597 = vsel %vm975, %v1594, %v1596
        %v1598 = vrot.slane %v1480, 1
        %v1599 = vrot.slane %v1481, 1
        %v1600 = vsel %vm975, %v1598, %v1599
        %v1601 = vrot.slane %v1482, 1
        %v1602 = vsel %vm975, %v1599, %v1601
        %v1603 = vrot.slane %v1483, 1
        %v1604 = vrot.slane %v1484, 1
        %v1605 = vsel %vm975, %v1603, %v1604
        %v1606 = vrot.slane %v1485, 1
        %v1607 = vsel %vm975, %v1604, %v1606
        %v1608 = vrot.slane %v1486, 1
        %v1609 = vrot.slane %v1487, 1
        %v1610 = vsel %vm975, %v1608, %v1609
        %v1611 = vrot.slane %v1488, 1
        %v1612 = vsel %vm975, %v1609, %v1611
        %v1613 = vrot.slane %v1489, 1
        %v1614 = vrot.slane %v1490, 1
        %v1615 = vsel %vm975, %v1613, %v1614
        %v1616 = vrot.slane %v1491, 1
        %v1617 = vsel %vm975, %v1614, %v1616
        %v1618 = vrot.slane %v1492, 1
        %v1619 = vrot.slane %v1493, 1
        %v1620 = vsel %vm975, %v1618, %v1619
        %v1621 = vrot.slane %v1494, 1
        %v1622 = vsel %vm975, %v1619, %v1621
        %v1655 = vadd.f32 %v1409, %v1545
        %v1656 = vadd.f32 %v1410, %v1547
        %v1657 = vadd.f32 %v1411, %v1550
        %v1658 = vadd.f32 %v1412, %v1552
        %v1659 = vadd.f32 %v1413, %v1555
        %v1660 = vadd.f32 %v1414, %v1557
        %v1661 = vadd.f32 %v1415, %v1560
        %v1662 = vadd.f32 %v1416, %v1562
        %v1663 = vadd.f32 %v1417, %v1565
        %v1664 = vadd.f32 %v1418, %v1567
        %v1665 = vadd.f32 %v1419, %v1570
        %v1666 = vadd.f32 %v1420, %v1572
        %v1667 = vadd.f32 %v1421, %v1575
        %v1668 = vadd.f32 %v1422, %v1577
        %v1669 = vadd.f32 %v1423, %v1580
        %v1670 = vadd.f32 %v1424, %v1582
        %v1671 = vadd.f32 %v1425, %v1585
        %v1672 = vadd.f32 %v1426, %v1587
        %v1673 = vadd.f32 %v1427, %v1590
        %v1674 = vadd.f32 %v1428, %v1592
        %v1675 = vadd.f32 %v1429, %v1595
        %v1676 = vadd.f32 %v1430, %v1597
        %v1677 = vadd.f32 %v1431, %v1600
        %v1678 = vadd.f32 %v1432, %v1602
        %v1679 = vadd.f32 %v1433, %v1605
        %v1680 = vadd.f32 %v1434, %v1607
        %v1681 = vadd.f32 %v1435, %v1610
        %v1682 = vadd.f32 %v1436, %v1612
        %v1683 = vadd.f32 %v1437, %v1615
        %v1684 = vadd.f32 %v1438, %v1617
        %v1685 = vadd.f32 %v1439, %v1620
        %v1686 = vadd.f32 %v1440, %v1622
        %v1687 = vld [vmem:[%s1364] sm:$0x2]
        %v1688 = vunpack.c.l.bf16 %v1687
        %v1689 = vperm.slane %v1688, 2
        %v1690 = vmul.f32 %v601, %v1689
        %v1691 = vmul.f32 %v605, %v1689
        %v1692 = vmul.f32 %v806, %v1689
        %v1693 = vmul.f32 %v610, %v1689
        %v1694 = vmul.f32 %v614, %v1689
        %v1695 = vmul.f32 %v811, %v1689
        %v1696 = vmul.f32 %v619, %v1689
        %v1697 = vmul.f32 %v623, %v1689
        %v1698 = vmul.f32 %v816, %v1689
        %v1699 = vmul.f32 %v628, %v1689
        %v1700 = vmul.f32 %v632, %v1689
        %v1701 = vmul.f32 %v821, %v1689
        %v1702 = vmul.f32 %v637, %v1689
        %v1703 = vmul.f32 %v641, %v1689
        %v1704 = vmul.f32 %v826, %v1689
        %v1705 = vmul.f32 %v646, %v1689
        %v1706 = vmul.f32 %v650, %v1689
        %v1707 = vmul.f32 %v831, %v1689
        %v1708 = vmul.f32 %v655, %v1689
        %v1709 = vmul.f32 %v659, %v1689
        %v1710 = vmul.f32 %v836, %v1689
        %v1711 = vmul.f32 %v664, %v1689
        %v1712 = vmul.f32 %v668, %v1689
        %v1713 = vmul.f32 %v841, %v1689
        %v1714 = vmul.f32 %v673, %v1689
        %v1715 = vmul.f32 %v677, %v1689
        %v1716 = vmul.f32 %v846, %v1689
        %v1717 = vmul.f32 %v682, %v1689
        %v1718 = vmul.f32 %v686, %v1689
        %v1719 = vmul.f32 %v851, %v1689
        %v1720 = vmul.f32 %v691, %v1689
        %v1721 = vmul.f32 %v695, %v1689
        %v1722 = vmul.f32 %v856, %v1689
        %v1723 = vmul.f32 %v700, %v1689
        %v1724 = vmul.f32 %v704, %v1689
        %v1725 = vmul.f32 %v861, %v1689
        %v1726 = vmul.f32 %v709, %v1689
        %v1727 = vmul.f32 %v713, %v1689
        %v1728 = vmul.f32 %v866, %v1689
        %v1729 = vmul.f32 %v718, %v1689
        %v1730 = vmul.f32 %v722, %v1689
        %v1731 = vmul.f32 %v871, %v1689
        %v1732 = vmul.f32 %v727, %v1689
        %v1733 = vmul.f32 %v731, %v1689
        %v1734 = vmul.f32 %v876, %v1689
        %v1735 = vmul.f32 %v1370, %v1689
        %v1736 = vmul.f32 %v1374, %v1689
        %v1737 = vmul.f32 %v1444, %v1689
        %v1786 = vrot.slane %v1690, 2
        %v1787 = vrot.slane %v1691, 2
        %v1788 = vsel %vm1219, %v1786, %v1787
        %v1789 = vrot.slane %v1692, 2
        %v1790 = vsel %vm1219, %v1787, %v1789
        %v1791 = vrot.slane %v1693, 2
        %v1792 = vrot.slane %v1694, 2
        %v1793 = vsel %vm1219, %v1791, %v1792
        %v1794 = vrot.slane %v1695, 2
        %v1795 = vsel %vm1219, %v1792, %v1794
        %v1796 = vrot.slane %v1696, 2
        %v1797 = vrot.slane %v1697, 2
        %v1798 = vsel %vm1219, %v1796, %v1797
        %v1799 = vrot.slane %v1698, 2
        %v1800 = vsel %vm1219, %v1797, %v1799
        %v1801 = vrot.slane %v1699, 2
        %v1802 = vrot.slane %v1700, 2
        %v1803 = vsel %vm1219, %v1801, %v1802
        %v1804 = vrot.slane %v1701, 2
        %v1805 = vsel %vm1219, %v1802, %v1804
        %v1806 = vrot.slane %v1702, 2
        %v1807 = vrot.slane %v1703, 2
        %v1808 = vsel %vm1219, %v1806, %v1807
        %v1809 = vrot.slane %v1704, 2
        %v1810 = vsel %vm1219, %v1807, %v1809
        %v1811 = vrot.slane %v1705, 2
        %v1812 = vrot.slane %v1706, 2
        %v1813 = vsel %vm1219, %v1811, %v1812
        %v1814 = vrot.slane %v1707, 2
        %v1815 = vsel %vm1219, %v1812, %v1814
        %v1816 = vrot.slane %v1708, 2
        %v1817 = vrot.slane %v1709, 2
        %v1818 = vsel %vm1219, %v1816, %v1817
        %v1819 = vrot.slane %v1710, 2
        %v1820 = vsel %vm1219, %v1817, %v1819
        %v1821 = vrot.slane %v1711, 2
        %v1822 = vrot.slane %v1712, 2
        %v1823 = vsel %vm1219, %v1821, %v1822
        %v1824 = vrot.slane %v1713, 2
        %v1825 = vsel %vm1219, %v1822, %v1824
        %v1826 = vrot.slane %v1714, 2
        %v1827 = vrot.slane %v1715, 2
        %v1828 = vsel %vm1219, %v1826, %v1827
        %v1829 = vrot.slane %v1716, 2
        %v1830 = vsel %vm1219, %v1827, %v1829
        %v1831 = vrot.slane %v1717, 2
        %v1832 = vrot.slane %v1718, 2
        %v1833 = vsel %vm1219, %v1831, %v1832
        %v1834 = vrot.slane %v1719, 2
        %v1835 = vsel %vm1219, %v1832, %v1834
        %v1836 = vrot.slane %v1720, 2
        %v1837 = vrot.slane %v1721, 2
        %v1838 = vsel %vm1219, %v1836, %v1837
        %v1839 = vrot.slane %v1722, 2
        %v1840 = vsel %vm1219, %v1837, %v1839
        %v1841 = vrot.slane %v1723, 2
        %v1842 = vrot.slane %v1724, 2
        %v1843 = vsel %vm1219, %v1841, %v1842
        %v1844 = vrot.slane %v1725, 2
        %v1845 = vsel %vm1219, %v1842, %v1844
        %v1846 = vrot.slane %v1726, 2
        %v1847 = vrot.slane %v1727, 2
        %v1848 = vsel %vm1219, %v1846, %v1847
        %v1849 = vrot.slane %v1728, 2
        %v1850 = vsel %vm1219, %v1847, %v1849
        %v1851 = vrot.slane %v1729, 2
        %v1852 = vrot.slane %v1730, 2
        %v1853 = vsel %vm1219, %v1851, %v1852
        %v1854 = vrot.slane %v1731, 2
        %v1855 = vsel %vm1219, %v1852, %v1854
        %v1856 = vrot.slane %v1732, 2
        %v1857 = vrot.slane %v1733, 2
        %v1858 = vsel %vm1219, %v1856, %v1857
        %v1859 = vrot.slane %v1734, 2
        %v1860 = vsel %vm1219, %v1857, %v1859
        %v1861 = vrot.slane %v1735, 2
        %v1862 = vrot.slane %v1736, 2
        %v1863 = vsel %vm1219, %v1861, %v1862
        %v1864 = vrot.slane %v1737, 2
        %v1865 = vsel %vm1219, %v1862, %v1864
        %v1898 = vadd.f32 %v1655, %v1788
        %v1899 = vadd.f32 %v1656, %v1790
        %v1900 = vadd.f32 %v1657, %v1793
        %v1901 = vadd.f32 %v1658, %v1795
        %v1902 = vadd.f32 %v1659, %v1798
        %v1903 = vadd.f32 %v1660, %v1800
        %v1904 = vadd.f32 %v1661, %v1803
        %v1905 = vadd.f32 %v1662, %v1805
        %v1906 = vadd.f32 %v1663, %v1808
        %v1907 = vadd.f32 %v1664, %v1810
        %v1908 = vadd.f32 %v1665, %v1813
        %v1909 = vadd.f32 %v1666, %v1815
        %v1910 = vadd.f32 %v1667, %v1818
        %v1911 = vadd.f32 %v1668, %v1820
        %v1912 = vadd.f32 %v1669, %v1823
        %v1913 = vadd.f32 %v1670, %v1825
        %v1914 = vadd.f32 %v1671, %v1828
        %v1915 = vadd.f32 %v1672, %v1830
        %v1916 = vadd.f32 %v1673, %v1833
        %v1917 = vadd.f32 %v1674, %v1835
        %v1918 = vadd.f32 %v1675, %v1838
        %v1919 = vadd.f32 %v1676, %v1840
        %v1920 = vadd.f32 %v1677, %v1843
        %v1921 = vadd.f32 %v1678, %v1845
        %v1922 = vadd.f32 %v1679, %v1848
        %v1923 = vadd.f32 %v1680, %v1850
        %v1924 = vadd.f32 %v1681, %v1853
        %v1925 = vadd.f32 %v1682, %v1855
        %v1926 = vadd.f32 %v1683, %v1858
        %v1927 = vadd.f32 %v1684, %v1860
        %v1928 = vadd.f32 %v1685, %v1863
        %v1929 = vadd.f32 %v1686, %v1865
        %s1930 = scalar_lea.vmem %s3, 4
        %v1931 = vld [vmem:[%s1930] sm:$0x1]
        %v1932 = vunpack.c.l.bf16 %v1931
        %1934 = vset.pattern.permute.xlu0 0
        %1935 = vperm.xlu0 %1934, %v568
        %v1936 = vpop.permute.xlu0 %1935
        %1938 = vset.pattern.permute.xlu0 0
        %1939 = vperm.xlu0 %1938, %v514
        %v1940 = vpop.permute.xlu0 %1939
        %v1942 = vperm.slane %v1932, 0
        %v1943 = vmul.f32 %v610, %v1942
        %v1944 = vmul.f32 %v614, %v1942
        %v1945 = vmul.f32 %v619, %v1942
        %v1946 = vmul.f32 %v623, %v1942
        %v1947 = vmul.f32 %v628, %v1942
        %v1948 = vmul.f32 %v632, %v1942
        %v1949 = vmul.f32 %v637, %v1942
        %v1950 = vmul.f32 %v641, %v1942
        %v1951 = vmul.f32 %v646, %v1942
        %v1952 = vmul.f32 %v650, %v1942
        %v1953 = vmul.f32 %v655, %v1942
        %v1954 = vmul.f32 %v659, %v1942
        %v1955 = vmul.f32 %v664, %v1942
        %v1956 = vmul.f32 %v668, %v1942
        %v1957 = vmul.f32 %v673, %v1942
        %v1958 = vmul.f32 %v677, %v1942
        %v1959 = vmul.f32 %v682, %v1942
        %v1960 = vmul.f32 %v686, %v1942
        %v1961 = vmul.f32 %v691, %v1942
        %v1962 = vmul.f32 %v695, %v1942
        %v1963 = vmul.f32 %v700, %v1942
        %v1964 = vmul.f32 %v704, %v1942
        %v1965 = vmul.f32 %v709, %v1942
        %v1966 = vmul.f32 %v713, %v1942
        %v1967 = vmul.f32 %v718, %v1942
        %v1968 = vmul.f32 %v722, %v1942
        %v1969 = vmul.f32 %v727, %v1942
        %v1970 = vmul.f32 %v731, %v1942
        %v1971 = vmul.f32 %v1370, %v1942
        %v1972 = vmul.f32 %v1374, %v1942
        %v1973 = vmul.f32 %v1936, %v1942
        %v1974 = vmul.f32 %v1940, %v1942
        %v1975 = vadd.f32 %v1898, %v1943
        %v1976 = vadd.f32 %v1899, %v1944
        %v1977 = vadd.f32 %v1900, %v1945
        %v1978 = vadd.f32 %v1901, %v1946
        %v1979 = vadd.f32 %v1902, %v1947
        %v1980 = vadd.f32 %v1903, %v1948
        %v1981 = vadd.f32 %v1904, %v1949
        %v1982 = vadd.f32 %v1905, %v1950
        %v1983 = vadd.f32 %v1906, %v1951
        %v1984 = vadd.f32 %v1907, %v1952
        %v1985 = vadd.f32 %v1908, %v1953
        %v1986 = vadd.f32 %v1909, %v1954
        %v1987 = vadd.f32 %v1910, %v1955
        %v1988 = vadd.f32 %v1911, %v1956
        %v1989 = vadd.f32 %v1912, %v1957
        %v1990 = vadd.f32 %v1913, %v1958
        %v1991 = vadd.f32 %v1914, %v1959
        %v1992 = vadd.f32 %v1915, %v1960
        %v1993 = vadd.f32 %v1916, %v1961
        %v1994 = vadd.f32 %v1917, %v1962
        %v1995 = vadd.f32 %v1918, %v1963
        %v1996 = vadd.f32 %v1919, %v1964
        %v1997 = vadd.f32 %v1920, %v1965
        %v1998 = vadd.f32 %v1921, %v1966
        %v1999 = vadd.f32 %v1922, %v1967
        %v2000 = vadd.f32 %v1923, %v1968
        %v2001 = vadd.f32 %v1924, %v1969
        %v2002 = vadd.f32 %v1925, %v1970
        %v2003 = vadd.f32 %v1926, %v1971
        %v2004 = vadd.f32 %v1927, %v1972
        %v2005 = vadd.f32 %v1928, %v1973
        %v2006 = vadd.f32 %v1929, %v1974
        %2008 = vset.pattern.permute.xlu0 0
        %2009 = vperm.xlu0 %2008, %v586
        %v2010 = vpop.permute.xlu0 %2009
        %v2012 = vperm.slane %v1932, 1
        %v2013 = vmul.f32 %v610, %v2012
        %v2014 = vmul.f32 %v614, %v2012
        %v2015 = vmul.f32 %v811, %v2012
        %v2016 = vmul.f32 %v619, %v2012
        %v2017 = vmul.f32 %v623, %v2012
        %v2018 = vmul.f32 %v816, %v2012
        %v2019 = vmul.f32 %v628, %v2012
        %v2020 = vmul.f32 %v632, %v2012
        %v2021 = vmul.f32 %v821, %v2012
        %v2022 = vmul.f32 %v637, %v2012
        %v2023 = vmul.f32 %v641, %v2012
        %v2024 = vmul.f32 %v826, %v2012
        %v2025 = vmul.f32 %v646, %v2012
        %v2026 = vmul.f32 %v650, %v2012
        %v2027 = vmul.f32 %v831, %v2012
        %v2028 = vmul.f32 %v655, %v2012
        %v2029 = vmul.f32 %v659, %v2012
        %v2030 = vmul.f32 %v836, %v2012
        %v2031 = vmul.f32 %v664, %v2012
        %v2032 = vmul.f32 %v668, %v2012
        %v2033 = vmul.f32 %v841, %v2012
        %v2034 = vmul.f32 %v673, %v2012
        %v2035 = vmul.f32 %v677, %v2012
        %v2036 = vmul.f32 %v846, %v2012
        %v2037 = vmul.f32 %v682, %v2012
        %v2038 = vmul.f32 %v686, %v2012
        %v2039 = vmul.f32 %v851, %v2012
        %v2040 = vmul.f32 %v691, %v2012
        %v2041 = vmul.f32 %v695, %v2012
        %v2042 = vmul.f32 %v856, %v2012
        %v2043 = vmul.f32 %v700, %v2012
        %v2044 = vmul.f32 %v704, %v2012
        %v2045 = vmul.f32 %v861, %v2012
        %v2046 = vmul.f32 %v709, %v2012
        %v2047 = vmul.f32 %v713, %v2012
        %v2048 = vmul.f32 %v866, %v2012
        %v2049 = vmul.f32 %v718, %v2012
        %v2050 = vmul.f32 %v722, %v2012
        %v2051 = vmul.f32 %v871, %v2012
        %v2052 = vmul.f32 %v727, %v2012
        %v2053 = vmul.f32 %v731, %v2012
        %v2054 = vmul.f32 %v876, %v2012
        %v2055 = vmul.f32 %v1370, %v2012
        %v2056 = vmul.f32 %v1374, %v2012
        %v2057 = vmul.f32 %v1444, %v2012
        %v2058 = vmul.f32 %v1936, %v2012
        %v2059 = vmul.f32 %v1940, %v2012
        %v2060 = vmul.f32 %v2010, %v2012
        %v2109 = vrot.slane %v2013, 1
        %v2110 = vrot.slane %v2014, 1
        %v2111 = vsel %vm975, %v2109, %v2110
        %v2112 = vrot.slane %v2015, 1
        %v2113 = vsel %vm975, %v2110, %v2112
        %v2114 = vrot.slane %v2016, 1
        %v2115 = vrot.slane %v2017, 1
        %v2116 = vsel %vm975, %v2114, %v2115
        %v2117 = vrot.slane %v2018, 1
        %v2118 = vsel %vm975, %v2115, %v2117
        %v2119 = vrot.slane %v2019, 1
        %v2120 = vrot.slane %v2020, 1
        %v2121 = vsel %vm975, %v2119, %v2120
        %v2122 = vrot.slane %v2021, 1
        %v2123 = vsel %vm975, %v2120, %v2122
        %v2124 = vrot.slane %v2022, 1
        %v2125 = vrot.slane %v2023, 1
        %v2126 = vsel %vm975, %v2124, %v2125
        %v2127 = vrot.slane %v2024, 1
        %v2128 = vsel %vm975, %v2125, %v2127
        %v2129 = vrot.slane %v2025, 1
        %v2130 = vrot.slane %v2026, 1
        %v2131 = vsel %vm975, %v2129, %v2130
        %v2132 = vrot.slane %v2027, 1
        %v2133 = vsel %vm975, %v2130, %v2132
        %v2134 = vrot.slane %v2028, 1
        %v2135 = vrot.slane %v2029, 1
        %v2136 = vsel %vm975, %v2134, %v2135
        %v2137 = vrot.slane %v2030, 1
        %v2138 = vsel %vm975, %v2135, %v2137
        %v2139 = vrot.slane %v2031, 1
        %v2140 = vrot.slane %v2032, 1
        %v2141 = vsel %vm975, %v2139, %v2140
        %v2142 = vrot.slane %v2033, 1
        %v2143 = vsel %vm975, %v2140, %v2142
        %v2144 = vrot.slane %v2034, 1
        %v2145 = vrot.slane %v2035, 1
        %v2146 = vsel %vm975, %v2144, %v2145
        %v2147 = vrot.slane %v2036, 1
        %v2148 = vsel %vm975, %v2145, %v2147
        %v2149 = vrot.slane %v2037, 1
        %v2150 = vrot.slane %v2038, 1
        %v2151 = vsel %vm975, %v2149, %v2150
        %v2152 = vrot.slane %v2039, 1
        %v2153 = vsel %vm975, %v2150, %v2152
        %v2154 = vrot.slane %v2040, 1
        %v2155 = vrot.slane %v2041, 1
        %v2156 = vsel %vm975, %v2154, %v2155
        %v2157 = vrot.slane %v2042, 1
        %v2158 = vsel %vm975, %v2155, %v2157
        %v2159 = vrot.slane %v2043, 1
        %v2160 = vrot.slane %v2044, 1
        %v2161 = vsel %vm975, %v2159, %v2160
        %v2162 = vrot.slane %v2045, 1
        %v2163 = vsel %vm975, %v2160, %v2162
        %v2164 = vrot.slane %v2046, 1
        %v2165 = vrot.slane %v2047, 1
        %v2166 = vsel %vm975, %v2164, %v2165
        %v2167 = vrot.slane %v2048, 1
        %v2168 = vsel %vm975, %v2165, %v2167
        %v2169 = vrot.slane %v2049, 1
        %v2170 = vrot.slane %v2050, 1
        %v2171 = vsel %vm975, %v2169, %v2170
        %v2172 = vrot.slane %v2051, 1
        %v2173 = vsel %vm975, %v2170, %v2172
        %v2174 = vrot.slane %v2052, 1
        %v2175 = vrot.slane %v2053, 1
        %v2176 = vsel %vm975, %v2174, %v2175
        %v2177 = vrot.slane %v2054, 1
        %v2178 = vsel %vm975, %v2175, %v2177
        %v2179 = vrot.slane %v2055, 1
        %v2180 = vrot.slane %v2056, 1
        %v2181 = vsel %vm975, %v2179, %v2180
        %v2182 = vrot.slane %v2057, 1
        %v2183 = vsel %vm975, %v2180, %v2182
        %v2184 = vrot.slane %v2058, 1
        %v2185 = vrot.slane %v2059, 1
        %v2186 = vsel %vm975, %v2184, %v2185
        %v2187 = vrot.slane %v2060, 1
        %v2188 = vsel %vm975, %v2185, %v2187
        %v2221 = vadd.f32 %v1975, %v2111
        %v2222 = vadd.f32 %v1976, %v2113
        %v2223 = vadd.f32 %v1977, %v2116
        %v2224 = vadd.f32 %v1978, %v2118
        %v2225 = vadd.f32 %v1979, %v2121
        %v2226 = vadd.f32 %v1980, %v2123
        %v2227 = vadd.f32 %v1981, %v2126
        %v2228 = vadd.f32 %v1982, %v2128
        %v2229 = vadd.f32 %v1983, %v2131
        %v2230 = vadd.f32 %v1984, %v2133
        %v2231 = vadd.f32 %v1985, %v2136
        %v2232 = vadd.f32 %v1986, %v2138
        %v2233 = vadd.f32 %v1987, %v2141
        %v2234 = vadd.f32 %v1988, %v2143
        %v2235 = vadd.f32 %v1989, %v2146
        %v2236 = vadd.f32 %v1990, %v2148
        %v2237 = vadd.f32 %v1991, %v2151
        %v2238 = vadd.f32 %v1992, %v2153
        %v2239 = vadd.f32 %v1993, %v2156
        %v2240 = vadd.f32 %v1994, %v2158
        %v2241 = vadd.f32 %v1995, %v2161
        %v2242 = vadd.f32 %v1996, %v2163
        %v2243 = vadd.f32 %v1997, %v2166
        %v2244 = vadd.f32 %v1998, %v2168
        %v2245 = vadd.f32 %v1999, %v2171
        %v2246 = vadd.f32 %v2000, %v2173
        %v2247 = vadd.f32 %v2001, %v2176
        %v2248 = vadd.f32 %v2002, %v2178
        %v2249 = vadd.f32 %v2003, %v2181
        %v2250 = vadd.f32 %v2004, %v2183
        %v2251 = vadd.f32 %v2005, %v2186
        %v2252 = vadd.f32 %v2006, %v2188
        %v2253 = vld [vmem:[%s1930] sm:$0x2]
        %v2254 = vunpack.c.l.bf16 %v2253
        %v2255 = vperm.slane %v2254, 2
        %v2256 = vmul.f32 %v610, %v2255
        %v2257 = vmul.f32 %v614, %v2255
        %v2258 = vmul.f32 %v811, %v2255
        %v2259 = vmul.f32 %v619, %v2255
        %v2260 = vmul.f32 %v623, %v2255
        %v2261 = vmul.f32 %v816, %v2255
        %v2262 = vmul.f32 %v628, %v2255
        %v2263 = vmul.f32 %v632, %v2255
        %v2264 = vmul.f32 %v821, %v2255
        %v2265 = vmul.f32 %v637, %v2255
        %v2266 = vmul.f32 %v641, %v2255
        %v2267 = vmul.f32 %v826, %v2255
        %v2268 = vmul.f32 %v646, %v2255
        %v2269 = vmul.f32 %v650, %v2255
        %v2270 = vmul.f32 %v831, %v2255
        %v2271 = vmul.f32 %v655, %v2255
        %v2272 = vmul.f32 %v659, %v2255
        %v2273 = vmul.f32 %v836, %v2255
        %v2274 = vmul.f32 %v664, %v2255
        %v2275 = vmul.f32 %v668, %v2255
        %v2276 = vmul.f32 %v841, %v2255
        %v2277 = vmul.f32 %v673, %v2255
        %v2278 = vmul.f32 %v677, %v2255
        %v2279 = vmul.f32 %v846, %v2255
        %v2280 = vmul.f32 %v682, %v2255
        %v2281 = vmul.f32 %v686, %v2255
        %v2282 = vmul.f32 %v851, %v2255
        %v2283 = vmul.f32 %v691, %v2255
        %v2284 = vmul.f32 %v695, %v2255
        %v2285 = vmul.f32 %v856, %v2255
        %v2286 = vmul.f32 %v700, %v2255
        %v2287 = vmul.f32 %v704, %v2255
        %v2288 = vmul.f32 %v861, %v2255
        %v2289 = vmul.f32 %v709, %v2255
        %v2290 = vmul.f32 %v713, %v2255
        %v2291 = vmul.f32 %v866, %v2255
        %v2292 = vmul.f32 %v718, %v2255
        %v2293 = vmul.f32 %v722, %v2255
        %v2294 = vmul.f32 %v871, %v2255
        %v2295 = vmul.f32 %v727, %v2255
        %v2296 = vmul.f32 %v731, %v2255
        %v2297 = vmul.f32 %v876, %v2255
        %v2298 = vmul.f32 %v1370, %v2255
        %v2299 = vmul.f32 %v1374, %v2255
        %v2300 = vmul.f32 %v1444, %v2255
        %v2301 = vmul.f32 %v1936, %v2255
        %v2302 = vmul.f32 %v1940, %v2255
        %v2303 = vmul.f32 %v2010, %v2255
        %v2352 = vrot.slane %v2256, 2
        %v2353 = vrot.slane %v2257, 2
        %v2354 = vsel %vm1219, %v2352, %v2353
        %v2355 = vrot.slane %v2258, 2
        %v2356 = vsel %vm1219, %v2353, %v2355
        %v2357 = vrot.slane %v2259, 2
        %v2358 = vrot.slane %v2260, 2
        %v2359 = vsel %vm1219, %v2357, %v2358
        %v2360 = vrot.slane %v2261, 2
        %v2361 = vsel %vm1219, %v2358, %v2360
        %v2362 = vrot.slane %v2262, 2
        %v2363 = vrot.slane %v2263, 2
        %v2364 = vsel %vm1219, %v2362, %v2363
        %v2365 = vrot.slane %v2264, 2
        %v2366 = vsel %vm1219, %v2363, %v2365
        %v2367 = vrot.slane %v2265, 2
        %v2368 = vrot.slane %v2266, 2
        %v2369 = vsel %vm1219, %v2367, %v2368
        %v2370 = vrot.slane %v2267, 2
        %v2371 = vsel %vm1219, %v2368, %v2370
        %v2372 = vrot.slane %v2268, 2
        %v2373 = vrot.slane %v2269, 2
        %v2374 = vsel %vm1219, %v2372, %v2373
        %v2375 = vrot.slane %v2270, 2
        %v2376 = vsel %vm1219, %v2373, %v2375
        %v2377 = vrot.slane %v2271, 2
        %v2378 = vrot.slane %v2272, 2
        %v2379 = vsel %vm1219, %v2377, %v2378
        %v2380 = vrot.slane %v2273, 2
        %v2381 = vsel %vm1219, %v2378, %v2380
        %v2382 = vrot.slane %v2274, 2
        %v2383 = vrot.slane %v2275, 2
        %v2384 = vsel %vm1219, %v2382, %v2383
        %v2385 = vrot.slane %v2276, 2
        %v2386 = vsel %vm1219, %v2383, %v2385
        %v2387 = vrot.slane %v2277, 2
        %v2388 = vrot.slane %v2278, 2
        %v2389 = vsel %vm1219, %v2387, %v2388
        %v2390 = vrot.slane %v2279, 2
        %v2391 = vsel %vm1219, %v2388, %v2390
        %v2392 = vrot.slane %v2280, 2
        %v2393 = vrot.slane %v2281, 2
        %v2394 = vsel %vm1219, %v2392, %v2393
        %v2395 = vrot.slane %v2282, 2
        %v2396 = vsel %vm1219, %v2393, %v2395
        %v2397 = vrot.slane %v2283, 2
        %v2398 = vrot.slane %v2284, 2
        %v2399 = vsel %vm1219, %v2397, %v2398
        %v2400 = vrot.slane %v2285, 2
        %v2401 = vsel %vm1219, %v2398, %v2400
        %v2402 = vrot.slane %v2286, 2
        %v2403 = vrot.slane %v2287, 2
        %v2404 = vsel %vm1219, %v2402, %v2403
        %v2405 = vrot.slane %v2288, 2
        %v2406 = vsel %vm1219, %v2403, %v2405
        %v2407 = vrot.slane %v2289, 2
        %v2408 = vrot.slane %v2290, 2
        %v2409 = vsel %vm1219, %v2407, %v2408
        %v2410 = vrot.slane %v2291, 2
        %v2411 = vsel %vm1219, %v2408, %v2410
        %v2412 = vrot.slane %v2292, 2
        %v2413 = vrot.slane %v2293, 2
        %v2414 = vsel %vm1219, %v2412, %v2413
        %v2415 = vrot.slane %v2294, 2
        %v2416 = vsel %vm1219, %v2413, %v2415
        %v2417 = vrot.slane %v2295, 2
        %v2418 = vrot.slane %v2296, 2
        %v2419 = vsel %vm1219, %v2417, %v2418
        %v2420 = vrot.slane %v2297, 2
        %v2421 = vsel %vm1219, %v2418, %v2420
        %v2422 = vrot.slane %v2298, 2
        %v2423 = vrot.slane %v2299, 2
        %v2424 = vsel %vm1219, %v2422, %v2423
        %v2425 = vrot.slane %v2300, 2
        %v2426 = vsel %vm1219, %v2423, %v2425
        %v2427 = vrot.slane %v2301, 2
        %v2428 = vrot.slane %v2302, 2
        %v2429 = vsel %vm1219, %v2427, %v2428
        %v2430 = vrot.slane %v2303, 2
        %v2431 = vsel %vm1219, %v2428, %v2430
        %v2464 = vadd.f32 %v2221, %v2354
        %v2465 = vadd.f32 %v2222, %v2356
        %v2466 = vadd.f32 %v2223, %v2359
        %v2467 = vadd.f32 %v2224, %v2361
        %v2468 = vadd.f32 %v2225, %v2364
        %v2469 = vadd.f32 %v2226, %v2366
        %v2470 = vadd.f32 %v2227, %v2369
        %v2471 = vadd.f32 %v2228, %v2371
        %v2472 = vadd.f32 %v2229, %v2374
        %v2473 = vadd.f32 %v2230, %v2376
        %v2474 = vadd.f32 %v2231, %v2379
        %v2475 = vadd.f32 %v2232, %v2381
        %v2476 = vadd.f32 %v2233, %v2384
        %v2477 = vadd.f32 %v2234, %v2386
        %v2478 = vadd.f32 %v2235, %v2389
        %v2479 = vadd.f32 %v2236, %v2391
        %v2480 = vadd.f32 %v2237, %v2394
        %v2481 = vadd.f32 %v2238, %v2396
        %v2482 = vadd.f32 %v2239, %v2399
        %v2483 = vadd.f32 %v2240, %v2401
        %v2484 = vadd.f32 %v2241, %v2404
        %v2485 = vadd.f32 %v2242, %v2406
        %v2486 = vadd.f32 %v2243, %v2409
        %v2487 = vadd.f32 %v2244, %v2411
        %v2488 = vadd.f32 %v2245, %v2414
        %v2489 = vadd.f32 %v2246, %v2416
        %v2490 = vadd.f32 %v2247, %v2419
        %v2491 = vadd.f32 %v2248, %v2421
        %v2492 = vadd.f32 %v2249, %v2424
        %v2493 = vadd.f32 %v2250, %v2426
        %v2494 = vadd.f32 %v2251, %v2429
        %v2495 = vadd.f32 %v2252, %v2431
        %v2496 = vld [vmem:[%s4] sm:$0x1]
        %v2498 = vperm.slane %v2496, 0
        %v2500 = vadd.f32 %v2464, %v2498
        %v2501 = vadd.f32 %v2465, %v2498
        %v2502 = vadd.f32 %v2466, %v2498
        %v2503 = vadd.f32 %v2467, %v2498
        %v2504 = vadd.f32 %v2468, %v2498
        %v2505 = vadd.f32 %v2469, %v2498
        %v2506 = vadd.f32 %v2470, %v2498
        %v2507 = vadd.f32 %v2471, %v2498
        %v2508 = vadd.f32 %v2472, %v2498
        %v2509 = vadd.f32 %v2473, %v2498
        %v2510 = vadd.f32 %v2474, %v2498
        %v2511 = vadd.f32 %v2475, %v2498
        %v2512 = vadd.f32 %v2476, %v2498
        %v2513 = vadd.f32 %v2477, %v2498
        %v2514 = vadd.f32 %v2478, %v2498
        %v2515 = vadd.f32 %v2479, %v2498
        %v2516 = vadd.f32 %v2480, %v2498
        %v2517 = vadd.f32 %v2481, %v2498
        %v2518 = vadd.f32 %v2482, %v2498
        %v2519 = vadd.f32 %v2483, %v2498
        %v2520 = vadd.f32 %v2484, %v2498
        %v2521 = vadd.f32 %v2485, %v2498
        %v2522 = vadd.f32 %v2486, %v2498
        %v2523 = vadd.f32 %v2487, %v2498
        %v2524 = vadd.f32 %v2488, %v2498
        %v2525 = vadd.f32 %v2489, %v2498
        %v2526 = vadd.f32 %v2490, %v2498
        %v2527 = vadd.f32 %v2491, %v2498
        %v2528 = vadd.f32 %v2492, %v2498
        %v2529 = vadd.f32 %v2493, %v2498
        %v2530 = vadd.f32 %v2494, %v2498
        %v2531 = vadd.f32 %v2495, %v2498
        %v2532 = vmax.f32 %v2500, 0.0
        %v2533 = vmax.f32 %v2501, 0.0
        %v2534 = vmax.f32 %v2502, 0.0
        %v2535 = vmax.f32 %v2503, 0.0
        %v2536 = vmax.f32 %v2504, 0.0
        %v2537 = vmax.f32 %v2505, 0.0
        %v2538 = vmax.f32 %v2506, 0.0
        %v2539 = vmax.f32 %v2507, 0.0
        %v2540 = vmax.f32 %v2508, 0.0
        %v2541 = vmax.f32 %v2509, 0.0
        %v2542 = vmax.f32 %v2510, 0.0
        %v2543 = vmax.f32 %v2511, 0.0
        %v2544 = vmax.f32 %v2512, 0.0
        %v2545 = vmax.f32 %v2513, 0.0
        %v2546 = vmax.f32 %v2514, 0.0
        %v2547 = vmax.f32 %v2515, 0.0
        %v2548 = vmax.f32 %v2516, 0.0
        %v2549 = vmax.f32 %v2517, 0.0
        %v2550 = vmax.f32 %v2518, 0.0
        %v2551 = vmax.f32 %v2519, 0.0
        %v2552 = vmax.f32 %v2520, 0.0
        %v2553 = vmax.f32 %v2521, 0.0
        %v2554 = vmax.f32 %v2522, 0.0
        %v2555 = vmax.f32 %v2523, 0.0
        %v2556 = vmax.f32 %v2524, 0.0
        %v2557 = vmax.f32 %v2525, 0.0
        %v2558 = vmax.f32 %v2526, 0.0
        %v2559 = vmax.f32 %v2527, 0.0
        %v2560 = vmax.f32 %v2528, 0.0
        %v2561 = vmax.f32 %v2529, 0.0
        %v2562 = vmax.f32 %v2530, 0.0
        %v2563 = vmax.f32 %v2531, 0.0
        %v2564 = vpack.c.bf16 %v2532, %v2532
        %v2565 = vpack.c.bf16 %v2533, %v2533
        %v2566 = vpack.c.bf16 %v2534, %v2534
        %v2567 = vpack.c.bf16 %v2535, %v2535
        %v2568 = vpack.c.bf16 %v2536, %v2536
        %v2569 = vpack.c.bf16 %v2537, %v2537
        %v2570 = vpack.c.bf16 %v2538, %v2538
        %v2571 = vpack.c.bf16 %v2539, %v2539
        %v2572 = vpack.c.bf16 %v2540, %v2540
        %v2573 = vpack.c.bf16 %v2541, %v2541
        %v2574 = vpack.c.bf16 %v2542, %v2542
        %v2575 = vpack.c.bf16 %v2543, %v2543
        %v2576 = vpack.c.bf16 %v2544, %v2544
        %v2577 = vpack.c.bf16 %v2545, %v2545
        %v2578 = vpack.c.bf16 %v2546, %v2546
        %v2579 = vpack.c.bf16 %v2547, %v2547
        %v2580 = vpack.c.bf16 %v2548, %v2548
        %v2581 = vpack.c.bf16 %v2549, %v2549
        %v2582 = vpack.c.bf16 %v2550, %v2550
        %v2583 = vpack.c.bf16 %v2551, %v2551
        %v2584 = vpack.c.bf16 %v2552, %v2552
        %v2585 = vpack.c.bf16 %v2553, %v2553
        %v2586 = vpack.c.bf16 %v2554, %v2554
        %v2587 = vpack.c.bf16 %v2555, %v2555
        %v2588 = vpack.c.bf16 %v2556, %v2556
        %v2589 = vpack.c.bf16 %v2557, %v2557
        %v2590 = vpack.c.bf16 %v2558, %v2558
        %v2591 = vpack.c.bf16 %v2559, %v2559
        %v2592 = vpack.c.bf16 %v2560, %v2560
        %v2593 = vpack.c.bf16 %v2561, %v2561
        %v2594 = vpack.c.bf16 %v2562, %v2562
        %v2595 = vpack.c.bf16 %v2563, %v2563
        %vm2596 = vcmask 519168
        %2597 = vst.msk [vmem:[%s334] sm:$0xf] %vm2596, %v2564
        %2598 = vst.msk [vmem:[%s334 + $0x4] sm:$0xf] %vm2596, %v2565
        %2599 = vst.msk [vmem:[%s334 + $0x8] sm:$0xf] %vm2596, %v2566
        %2600 = vst.msk [vmem:[%s334 + $0xc] sm:$0xf] %vm2596, %v2567
        %2601 = vst.msk [vmem:[%s334 + $0x10] sm:$0xf] %vm2596, %v2568
        %2602 = vst.msk [vmem:[%s334 + $0x14] sm:$0xf] %vm2596, %v2569
        %2603 = vst.msk [vmem:[%s334 + $0x18] sm:$0xf] %vm2596, %v2570
        %2604 = vst.msk [vmem:[%s334 + $0x1c] sm:$0xf] %vm2596, %v2571
        %2605 = vst.msk [vmem:[%s334 + $0x20] sm:$0xf] %vm2596, %v2572
        %2606 = vst.msk [vmem:[%s334 + $0x24] sm:$0xf] %vm2596, %v2573
        %2607 = vst.msk [vmem:[%s334 + $0x28] sm:$0xf] %vm2596, %v2574
        %2608 = vst.msk [vmem:[%s334 + $0x2c] sm:$0xf] %vm2596, %v2575
        %2609 = vst.msk [vmem:[%s334 + $0x30] sm:$0xf] %vm2596, %v2576
        %2610 = vst.msk [vmem:[%s334 + $0x34] sm:$0xf] %vm2596, %v2577
        %2611 = vst.msk [vmem:[%s334 + $0x38] sm:$0xf] %vm2596, %v2578
        %2612 = vst.msk [vmem:[%s334 + $0x3c] sm:$0xf] %vm2596, %v2579
        %2613 = vst.msk [vmem:[%s334 + $0x40] sm:$0xf] %vm2596, %v2580
        %2614 = vst.msk [vmem:[%s334 + $0x44] sm:$0xf] %vm2596, %v2581
        %2615 = vst.msk [vmem:[%s334 + $0x48] sm:$0xf] %vm2596, %v2582
        %2616 = vst.msk [vmem:[%s334 + $0x4c] sm:$0xf] %vm2596, %v2583
        %2617 = vst.msk [vmem:[%s334 + $0x50] sm:$0xf] %vm2596, %v2584
        %2618 = vst.msk [vmem:[%s334 + $0x54] sm:$0xf] %vm2596, %v2585
        %2619 = vst.msk [vmem:[%s334 + $0x58] sm:$0xf] %vm2596, %v2586
        %2620 = vst.msk [vmem:[%s334 + $0x5c] sm:$0xf] %vm2596, %v2587
        %2621 = vst.msk [vmem:[%s334 + $0x60] sm:$0xf] %vm2596, %v2588
        %2622 = vst.msk [vmem:[%s334 + $0x64] sm:$0xf] %vm2596, %v2589
        %2623 = vst.msk [vmem:[%s334 + $0x68] sm:$0xf] %vm2596, %v2590
        %2624 = vst.msk [vmem:[%s334 + $0x6c] sm:$0xf] %vm2596, %v2591
        %2625 = vst.msk [vmem:[%s334 + $0x70] sm:$0xf] %vm2596, %v2592
        %2626 = vst.msk [vmem:[%s334 + $0x74] sm:$0xf] %vm2596, %v2593
        %2627 = vst.msk [vmem:[%s334 + $0x78] sm:$0xf] %vm2596, %v2594
        %2628 = vst.msk [vmem:[%s334 + $0x7c] sm:$0xf] %vm2596, %v2595
        %s2629 = sand.u32 %s183, 1
        %s2630 = scalar_lea.sflag [#allocation3], %s2629
        %s2631 = sand.u32 %s183, 1
        %s2632 = smul.addr %s2631, 128
        %s2633 = scalar_lea.vmem [#allocation2], %s2632
        // Predicated region
        $region41: #{tpu_custom_call.1} parent=39 // pred_check
          %p2634 = pneg %p193
        $region42: #{tpu_custom_call.1} parent=39 // pred_check_branch
          %2636 = sbr.rel (%p2634) target = $region44
        $region43: #{tpu_custom_call.1} parent=39 // pred_region
          %s2637 = smul.u32 16, %s24
          %2639 = vsyncadd %s2630, 0
          %s2640 = smul.addr %s2637, 2
          %s2641 = smul.addr %s23, 32
          %s2642 = sadd.s32 %s2640, %s2641
          %s2643 = smul.addr %s2642, 4
          %s2644 = scalar_lea.hbm %s5, %s2643
          %s2645 = sshll.u32 %s2633, 4
          %s2646 = int_to_ptr.vmem [resolvable:$true] %s2645
          %s2647 = sshll.u32 %s2644, 4
          %s2648 = int_to_ptr.hbm [resolvable:$true] %s2647
          %2653 = dma.vmem_to_hbm [thread:$0]  %s2646, 2048, %s2648, %s2630, 64, 64, 4
        $region44: #{tpu_custom_call.1} parent=39 // pred_fallthru
          _
      $region40: #{tpu_custom_call.1} parent=5 // pred_fallthru
        _
      %p2654 = scmp.le.s32.totalorder 2, %s14
      // Predicated region
      $region45: #{tpu_custom_call.1} parent=5 // pred_check
        %p2655 = pneg %p2654
      $region46: #{tpu_custom_call.1} parent=5 // pred_check_branch
        %2657 = sbr.rel (%p2655) target = $region48
      $region47: #{tpu_custom_call.1} parent=5 // pred_region
        %s2658 = ssub.s32 %s14, 2
        // Predicated region
        $region49: #{tpu_custom_call.1} parent=47 // pred_check
          %p2659 = pneg %p199
        $region50: #{tpu_custom_call.1} parent=47 // pred_check_branch
          %2661 = sbr.rel (%p2659) target = $region52
        $region51: #{tpu_custom_call.1} parent=47 // pred_region
          %s2662 = sand.u32 %s184, 1
          %s2663 = scalar_lea.sflag [#allocation3], %s2662
          %s2664 = sand.u32 %s184, 1
          %s2665 = smul.addr %s2664, 128
          %s2666 = scalar_lea.vmem [#allocation2], %s2665
          %2668 = dma.done %s2663, 2048
        $region52: #{tpu_custom_call.1} parent=47 // pred_fallthru
          _
      $region48: #{tpu_custom_call.1} parent=5 // pred_fallthru
        _
    $region6: #{tpu_custom_call.1} parent=1 // loop_footer
      %s18 = sadd.s32 1, %s14
    $region7: #{tpu_custom_call.1} parent=1 // loop_footer_branch
      %13 = sbr.rel target = $region3
    $region8: #{tpu_custom_call.1} parent=1 // loop_exit
      _
    %2669 = vsyncpa [#allocation3], 1
    %s2670 = scalar_lea.sflag [#allocation3], 1
    %2671 = vsyncpa %s2670, 1

</llo_original>
